<compile_context>
chip_gen: v6e
topology: v6e:2x2x1
jax: 0.10.0
libtpu: 0.0.40
codegen_flags: <defaults>
</compile_context>

<pallas_src>
import jax
import jax.numpy as jnp
from functools import partial
from jax.experimental import pallas as pl
from jax.experimental.pallas import tpu as pltpu  # noqa: F401  (TPU backend)


# ------------------------------------------------------------------------
# Pallas kernels
# ------------------------------------------------------------------------

def _pfn_kernel(x_ref, w_ref, shift_ref, o_ref, *, points_per_pillar):
    # x: (P*N, 16) masked, augmented, pre-flattened pillar point features
    # w: (16, 64) Linear weight with the BatchNorm scale folded in
    # shift: (1, 64) folded BatchNorm shift
    y = jnp.dot(x_ref[...], w_ref[...],
                preferred_element_type=jnp.float32)          # Linear(16 -> 64)
    y = jnp.maximum(y + shift_ref[...], 0.0)                  # BN shift + ReLU
    pn, c = y.shape
    y = y.reshape(pn // points_per_pillar, points_per_pillar, c)
    o_ref[...] = jnp.max(y, axis=1).astype(o_ref.dtype)       # max over points


def pfn_forward(feats_flat, w, shift, *, num_points):
    PN, _ = feats_flat.shape
    P = PN // num_points
    C = w.shape[1]
    return pl.pallas_call(
        partial(_pfn_kernel, points_per_pillar=num_points),
        out_shape=jax.ShapeDtypeStruct((P, C), jnp.float32),
    )(feats_flat, w, shift)


def _backbone_heads_kernel(x_ref, wb_ref, bb_ref, wh_ref, bh_ref, o_ref):
    # x:  (M, 64)  bf16 BEV canvas rows
    # wb: (64, 256) bf16 backbone 1x1 projection, bb: (1, 256) f32
    # wh: (256, 128) bf16 concatenated [cls|reg|dir] head weights (zero padded)
    # bh: (1, 128) f32 concatenated head biases (zero padded)
    s = jnp.dot(x_ref[...], wb_ref[...],
                preferred_element_type=jnp.float32)           # backbone proj
    s = jnp.maximum(s + bb_ref[...], 0.0)                     # + bias + ReLU
    h = jnp.dot(s.astype(wh_ref.dtype), wh_ref[...],
                preferred_element_type=jnp.float32)           # all heads at once
    o_ref[...] = (h + bh_ref[...]).astype(o_ref.dtype)


def backbone_and_heads(canvas_bf16, wb, bb, wh, bh):
    M = canvas_bf16.shape[0]
    Cout = wh.shape[1]
    return pl.pallas_call(
        _backbone_heads_kernel,
        out_shape=jax.ShapeDtypeStruct((M, Cout), jnp.float32),
    )(canvas_bf16, wb, bb, wh, bh)


# ------------------------------------------------------------------------
# Model config (small synthetic shapes) + deterministic parameter init
# ------------------------------------------------------------------------

VOXEL_SIZE = (0.4, 0.4, 4.0)
PC_RANGE = (0.0, -3.2, -3.0, 6.4, 3.2, 1.0)      # -> grid 16 x 16, nz = 1
GRID_H, GRID_W = 16, 16
PFN_IN = 10                                      # 4 raw + 3 cluster + 3 center
PFN_IN_PAD = 16                                  # padded contraction dim
PFN_OUT = 64
BEV_C = 128 * 2                                  # backbone output channels
ANCHOR_NUM = 2
NUM_BINS = 2
HEAD_WIDTHS = (ANCHOR_NUM, 7 * ANCHOR_NUM, NUM_BINS * ANCHOR_NUM)  # (2, 14, 4)
HEAD_TOT = sum(HEAD_WIDTHS)                      # 20
HEAD_PAD = 128                                   # lane-dense padded head output


def init_params(key):
    ks = jax.random.split(key, 5)
    p = {}

    # --- PillarVFE: PFNLayer Linear(10, 64, bias=False) + BatchNorm1d(64, eps=1e-3)
    w_pfn = 0.1 * jax.random.normal(ks[0], (PFN_IN, PFN_OUT), jnp.float32)
    gamma = jnp.ones((1, PFN_OUT), jnp.float32)
    beta = jnp.zeros((1, PFN_OUT), jnp.float32)
    run_mean = jnp.zeros((1, PFN_OUT), jnp.float32)
    run_var = jnp.ones((1, PFN_OUT), jnp.float32)
    eps = 1e-3
    scale = gamma / jnp.sqrt(run_var + eps)
    # Fold BN scale into the weight, keep only the shift; pad K 10 -> 16.
    w_folded = w_pfn * scale                                   # (10, 64)
    p["pfn_w"] = jnp.concatenate(
        [w_folded, jnp.zeros((PFN_IN_PAD - PFN_IN, PFN_OUT), jnp.float32)], axis=0)
    p["pfn_shift"] = beta - run_mean * scale                   # (1, 64)

    # --- Backbone projection 64 -> 256 (bf16 weights for the MXU path).
    # TODO(synk): DeformableTransformerBackbone (deformable attention +
    # multi-scale FPN) source was not provided; replaced with a fused 1x1
    # projection producing 'spatial_features_2d'.
    p["backbone_w"] = (0.05 * jax.random.normal(
        ks[1], (PFN_OUT, BEV_C), jnp.float32)).astype(jnp.bfloat16)
    p["backbone_b"] = jnp.zeros((1, BEV_C), jnp.float32)

    # --- Heads: cls/reg/dir 1x1 convs concatenated into one lane-dense matmul.
    cls_w = 0.05 * jax.random.normal(ks[2], (BEV_C, HEAD_WIDTHS[0]), jnp.float32)
    reg_w = 0.05 * jax.random.normal(ks[3], (BEV_C, HEAD_WIDTHS[1]), jnp.float32)
    dir_w = 0.05 * jax.random.normal(ks[4], (BEV_C, HEAD_WIDTHS[2]), jnp.float32)
    heads_w = jnp.concatenate(
        [cls_w, reg_w, dir_w,
         jnp.zeros((BEV_C, HEAD_PAD - HEAD_TOT), jnp.float32)], axis=1)
    p["heads_w"] = heads_w.astype(jnp.bfloat16)                # (256, 128)
    p["heads_b"] = jnp.zeros((1, HEAD_PAD), jnp.float32)       # cls/reg/dir biases = 0
    return p


# ------------------------------------------------------------------------
# Forward pass (glue in plain JAX, compute in two Pallas kernels)
# ------------------------------------------------------------------------

@partial(jax.jit, static_argnames=("batch_size",))
def forward(params, voxel_features, voxel_coords, voxel_num_points, *, batch_size):
    P, N, _ = voxel_features.shape

    vx, vy, vz = VOXEL_SIZE
    x_off = vx / 2.0 + PC_RANGE[0]
    y_off = vy / 2.0 + PC_RANGE[1]
    z_off = vz / 2.0 + PC_RANGE[2]

    # --- PillarVFE feature augmentation (glue; XLA fuses mask + concat) ---
    num = jnp.maximum(voxel_num_points.astype(jnp.float32), 1.0)
    mask = (jnp.arange(N)[None, :] < voxel_num_points[:, None]
            ).astype(jnp.float32)[..., None]                       # (P, N, 1)
    points_mean = voxel_features[:, :, :3].sum(axis=1, keepdims=True) / num[:, None, None]
    f_cluster = voxel_features[:, :, :3] - points_mean
    cf = voxel_coords.astype(jnp.float32)
    f_center = jnp.stack(
        [voxel_features[:, :, 0] - (cf[:, 3:4] * vx + x_off),
         voxel_features[:, :, 1] - (cf[:, 2:3] * vy + y_off),
         voxel_features[:, :, 2] - (cf[:, 1:2] * vz + z_off)], axis=-1)
    feats = jnp.concatenate(
        [voxel_features, f_cluster, f_center,
         jnp.zeros((P, N, PFN_IN_PAD - PFN_IN), jnp.float32)], axis=-1)   # (P, N, 16)
    feats = feats * mask                                             # mask padded points
    feats_flat = feats.reshape(P * N, PFN_IN_PAD)                    # flatten outside kernel

    # --- PFN layer (Pallas: linear(+folded BN) + ReLU + max-over-points) ---
    pillar_feats = pfn_forward(feats_flat, params["pfn_w"], params["pfn_shift"],
                               num_points=N)                         # (P, 64)

    # --- PointPillarScatter (XLA scatter into dense NHWC BEV canvas) ---
    # Left in XLA: fusing it into the PFN output would need a per-pillar grid
    # (pl.Element scatter), reintroducing per-step overhead at this scale.
    flat_idx = (voxel_coords[:, 0] * (GRID_H * GRID_W)
                + voxel_coords[:, 2] * GRID_W + voxel_coords[:, 3])
    canvas = jnp.zeros((batch_size * GRID_H * GRID_W, PFN_OUT), jnp.bfloat16)
    canvas = canvas.at[flat_idx].set(pillar_feats.astype(jnp.bfloat16))  # (B*H*W, 64)

    # --- Fused backbone projection + cls/reg/dir heads (one Pallas kernel) ---
    head_out = backbone_and_heads(canvas, params["backbone_w"], params["backbone_b"],
                                  params["heads_w"], params["heads_b"])  # (B*H*W, 128)

    c0 = HEAD_WIDTHS[0]
    c1 = c0 + HEAD_WIDTHS[1]
    c2 = c1 + HEAD_WIDTHS[2]
    psm = head_out[:, :c0]
    rm = head_out[:, c0:c1]
    dm = head_out[:, c1:c2]

    def to_nchw(x):
        c = x.shape[-1]
        return x.reshape(batch_size, GRID_H, GRID_W, c).transpose(0, 3, 1, 2)

    return {"psm": to_nchw(psm), "rm": to_nchw(rm), "dir_preds": to_nchw(dm)}


# ------------------------------------------------------------------------
# Main
# ------------------------------------------------------------------------

if __name__ == "__main__":
    key = jax.random.PRNGKey(0)
    k_param, k_feat, k_xy = jax.random.split(key, 3)

    params = init_params(k_param)

    B = 2
    P = 64          # total pillars (32 per batch sample)
    N = 16          # max points per pillar

    # Synthetic voxelized point cloud.
    voxel_num_points = jnp.concatenate(
        [jnp.full((P // 2,), 12, jnp.int32), jnp.full((P // 2,), 7, jnp.int32)])
    pts = jax.random.uniform(k_feat, (P, N, 4), jnp.float32)
    pts = pts * jnp.array([6.4, 6.4, 4.0, 1.0]) + jnp.array([0.0, -3.2, -3.0, 0.0])
    valid = (jnp.arange(N)[None, :] < voxel_num_points[:, None]).astype(jnp.float32)
    voxel_features = pts * valid[..., None]       # padded points are zero (as in voxelizer)

    # Unique (y, x) cells per batch sample; coords are (batch, z, y, x).
    per_b = P // B
    cells = jax.random.permutation(k_xy, GRID_H * GRID_W)[:per_b]
    ys, xs = cells // GRID_W, cells % GRID_W
    coords_list = []
    for b in range(B):
        coords_list.append(jnp.stack(
            [jnp.full((per_b,), b, jnp.int32), jnp.zeros((per_b,), jnp.int32),
             ys.astype(jnp.int32), xs.astype(jnp.int32)], axis=1))
    voxel_coords = jnp.concatenate(coords_list, axis=0)   # (P, 4)

    out = forward(params, voxel_features, voxel_coords, voxel_num_points,
                  batch_size=B)
    jax.block_until_ready(out)

    assert out["psm"].shape == (B, ANCHOR_NUM, GRID_H, GRID_W)
    assert out["rm"].shape == (B, 7 * ANCHOR_NUM, GRID_H, GRID_W)
    assert out["dir_preds"].shape == (B, NUM_BINS * ANCHOR_NUM, GRID_H, GRID_W)
    print("KERNEL_OK")
</pallas_src>

<mosaic_0001>
module attributes {stable_mosaic.version = 11 : i64} {
  func.func @_pfn_kernel(%arg0: memref<1024x16xf32, #tpu.memory_space<vmem>>, %arg1: memref<16x64xf32, #tpu.memory_space<vmem>>, %arg2: memref<1x64xf32, #tpu.memory_space<vmem>>, %arg3: memref<64x64xf32, #tpu.memory_space<vmem>>) attributes {dimension_semantics = [], scalar_prefetch = 0 : i64, scratch_operands = 0 : i64, tpu.core_type = #tpu.core_type<tc>} {
    %c0 = arith.constant 0 : index
    %c0_0 = arith.constant 0 : index
    %0 = vector.load %arg0[%c0, %c0_0] : memref<1024x16xf32, #tpu.memory_space<vmem>>, vector<1024x16xf32>
    %c0_1 = arith.constant 0 : index
    %c0_2 = arith.constant 0 : index
    %1 = vector.load %arg1[%c0_1, %c0_2] : memref<16x64xf32, #tpu.memory_space<vmem>>, vector<16x64xf32>
    %cst = arith.constant dense<0.000000e+00> : vector<1024x64xf32>
    %2 = tpu.matmul %0, %1, %cst {dimension_numbers = #tpu.dot_dimension_numbers<[1], [0], [0], [1], [0, 0, 1, 1], [], []>} : vector<1024x16xf32>, vector<16x64xf32>, vector<1024x64xf32> -> vector<1024x64xf32>
    %c0_3 = arith.constant 0 : index
    %c0_4 = arith.constant 0 : index
    %3 = vector.load %arg2[%c0_3, %c0_4] : memref<1x64xf32, #tpu.memory_space<vmem>>, vector<1x64xf32>
    %4 = vector.broadcast %3 : vector<1x64xf32> to vector<1024x64xf32>
    %5 = arith.addf %2, %4 : vector<1024x64xf32>
    %cst_5 = arith.constant 0.000000e+00 : f32
    %6 = vector.broadcast %cst_5 : f32 to vector<1024x64xf32>
    %7 = arith.maximumf %5, %6 : vector<1024x64xf32>
    %8 = vector.shape_cast %7 : vector<1024x64xf32> to vector<64x16x64xf32>
    %cst_6 = arith.constant dense<0xFF800000> : vector<64x64xf32>
    %9 = vector.multi_reduction <maximumf>, %8, %cst_6 [1] : vector<64x16x64xf32> to vector<64x64xf32>
    %c0_7 = arith.constant 0 : index
    %c0_8 = arith.constant 0 : index
    %10 = vector.load %arg3[%c0_7, %c0_8] : memref<64x64xf32, #tpu.memory_space<vmem>>, vector<64x64xf32>
    tpu.vector_store %arg3[%c0_7, %c0_8], %9 {strides = array<i32>} : memref<64x64xf32, #tpu.memory_space<vmem>>, vector<64x64xf32>,
    return
  }
}

module attributes {stable_mosaic.version = 11 : i64} {
  func.func @_backbone_heads_kernel(%arg0: memref<512x64xbf16, #tpu.memory_space<vmem>>, %arg1: memref<64x256xbf16, #tpu.memory_space<vmem>>, %arg2: memref<1x256xf32, #tpu.memory_space<vmem>>, %arg3: memref<256x128xbf16, #tpu.memory_space<vmem>>, %arg4: memref<1x128xf32, #tpu.memory_space<vmem>>, %arg5: memref<512x128xf32, #tpu.memory_space<vmem>>) attributes {dimension_semantics = [], scalar_prefetch = 0 : i64, scratch_operands = 0 : i64, tpu.core_type = #tpu.core_type<tc>} {
    %c0 = arith.constant 0 : index
    %c0_0 = arith.constant 0 : index
    %0 = vector.load %arg0[%c0, %c0_0] : memref<512x64xbf16, #tpu.memory_space<vmem>>, vector<512x64xbf16>
    %c0_1 = arith.constant 0 : index
    %c0_2 = arith.constant 0 : index
    %1 = vector.load %arg1[%c0_1, %c0_2] : memref<64x256xbf16, #tpu.memory_space<vmem>>, vector<64x256xbf16>
    %cst = arith.constant dense<0.000000e+00> : vector<512x256xf32>
    %2 = tpu.matmul %0, %1, %cst {dimension_numbers = #tpu.dot_dimension_numbers<[1], [0], [0], [1], [0, 0, 1, 1], [], []>} : vector<512x64xbf16>, vector<64x256xbf16>, vector<512x256xf32> -> vector<512x256xf32>
    %c0_3 = arith.constant 0 : index
    %c0_4 = arith.constant 0 : index
    %3 = vector.load %arg2[%c0_3, %c0_4] : memref<1x256xf32, #tpu.memory_space<vmem>>, vector<1x256xf32>
    %4 = vector.broadcast %3 : vector<1x256xf32> to vector<512x256xf32>
    %5 = arith.addf %2, %4 : vector<512x256xf32>
    %cst_5 = arith.constant 0.000000e+00 : f32
    %6 = vector.broadcast %cst_5 : f32 to vector<512x256xf32>
    %7 = arith.maximumf %5, %6 : vector<512x256xf32>
    %8 = arith.truncf %7 : vector<512x256xf32> to vector<512x256xbf16>
    %c0_6 = arith.constant 0 : index
    %c0_7 = arith.constant 0 : index
    %9 = vector.load %arg3[%c0_6, %c0_7] : memref<256x128xbf16, #tpu.memory_space<vmem>>, vector<256x128xbf16>
    %cst_8 = arith.constant dense<0.000000e+00> : vector<512x128xf32>
    %10 = tpu.matmul %8, %9, %cst_8 {dimension_numbers = #tpu.dot_dimension_numbers<[1], [0], [0], [1], [0, 0, 1, 1], [], []>} : vector<512x256xbf16>, vector<256x128xbf16>, vector<512x128xf32> -> vector<512x128xf32>
    %c0_9 = arith.constant 0 : index
    %c0_10 = arith.constant 0 : index
    %11 = vector.load %arg4[%c0_9, %c0_10] : memref<1x128xf32, #tpu.memory_space<vmem>>, vector<1x128xf32>
    %12 = vector.broadcast %11 : vector<1x128xf32> to vector<512x128xf32>
    %13 = arith.addf %10, %12 : vector<512x128xf32>
    %c0_11 = arith.constant 0 : index
    %c0_12 = arith.constant 0 : index
    %14 = vector.load %arg5[%c0_11, %c0_12] : memref<512x128xf32, #tpu.memory_space<vmem>>, vector<512x128xf32>
    tpu.vector_store %arg5[%c0_11, %c0_12], %13 {strides = array<i32>} : memref<512x128xf32, #tpu.memory_space<vmem>>, vector<512x128xf32>,
    return
  }
}

</mosaic_0001>

<llo_original>
// kernel: forward.3
$region0: #{forward.3}
  #allocation0 [shape = 'u32[]', space=smem, size = 0x4, offset = 0x4, fixed_abs, tag = 'smem constant byte address 0x4 - core index']
  #allocation1 [shape = 'u32[144,128]{1,0:T(1,128)}', space=vmem, size = 0x12000, scoped, tag = 'internal scratch']
  %s0 = inlined_call_operand.vmem [shape: bf16[512,64], index: 0, kind: input, shape index: {}]
  %s1 = inlined_call_operand.vmem [shape: bf16[64,256], index: 1, kind: input, shape index: {}]
  %s2 = inlined_call_operand.vmem [shape: f32[1,256], index: 2, kind: input, shape index: {}]
  %s3 = inlined_call_operand.vmem [shape: bf16[256,128], index: 3, kind: input, shape index: {}]
  %s4 = inlined_call_operand.vmem [shape: f32[1,128], index: 4, kind: input, shape index: {}]
  %s5 = inlined_call_operand.vmem [shape: f32[512,128], index: 5, kind: output, shape index: {}]
  %s6 = sld [smem:[#allocation0]]
  $region30: #{forward.3} parent=0
    _
  %s8 = ssub.s32 1, %s6
  %s9 = scalar_select 0, %s8, %s6
  // Predicated region
  $region2: #{forward.3} parent=0 // pred_check
    _
  $region3: #{forward.3} parent=0 // pred_check_branch
    %11 = sbr.rel (0) target = $region5
  $region4: #{forward.3} parent=0 // pred_region
    _
  $region5: #{forward.3} parent=0 // pred_fallthru
    _
  // Predicated region
  $region6: #{forward.3} parent=0 // pred_check
    _
  $region7: #{forward.3} parent=0 // pred_check_branch
    %13 = sbr.rel (0) target = $region9
  $region8: #{forward.3} parent=0 // pred_region
    _
  $region9: #{forward.3} parent=0 // pred_fallthru
    _
  // Predicated region
  $region10: #{forward.3} parent=0 // pred_check
    _
  $region11: #{forward.3} parent=0 // pred_check_branch
    %15 = sbr.rel (0) target = $region13
  $region12: #{forward.3} parent=0 // pred_region
    _
  $region13: #{forward.3} parent=0 // pred_fallthru
    _
  // Predicated region
  $region14: #{forward.3} parent=0 // pred_check
    _
  $region15: #{forward.3} parent=0 // pred_check_branch
    %17 = sbr.rel (0) target = $region17
  $region16: #{forward.3} parent=0 // pred_region
    _
  $region17: #{forward.3} parent=0 // pred_fallthru
    _
  // Predicated region
  $region18: #{forward.3} parent=0 // pred_check
    _
  $region19: #{forward.3} parent=0 // pred_check_branch
    %19 = sbr.rel (0) target = $region21
  $region20: #{forward.3} parent=0 // pred_region
    _
  $region21: #{forward.3} parent=0 // pred_fallthru
    _
  %v21 = vld [vmem:[%s0] sm:$0xf]
  %v22 = vld [vmem:[%s0 + $0x4] sm:$0xf]
  %v23 = vld [vmem:[%s0 + $0x8] sm:$0xf]
  %v24 = vld [vmem:[%s0 + $0xc] sm:$0xf]
  %v25 = vld [vmem:[%s0 + $0x10] sm:$0xf]
  %v26 = vld [vmem:[%s0 + $0x14] sm:$0xf]
  %v27 = vld [vmem:[%s0 + $0x18] sm:$0xf]
  %v28 = vld [vmem:[%s0 + $0x1c] sm:$0xf]
  %v29 = vld [vmem:[%s0 + $0x20] sm:$0xf]
  %v30 = vld [vmem:[%s0 + $0x24] sm:$0xf]
  %v31 = vld [vmem:[%s0 + $0x28] sm:$0xf]
  %v32 = vld [vmem:[%s0 + $0x2c] sm:$0xf]
  %v33 = vld [vmem:[%s0 + $0x30] sm:$0xf]
  %v34 = vld [vmem:[%s0 + $0x34] sm:$0xf]
  %v35 = vld [vmem:[%s0 + $0x38] sm:$0xf]
  %v36 = vld [vmem:[%s0 + $0x3c] sm:$0xf]
  %v37 = vld [vmem:[%s0 + $0x40] sm:$0xf]
  %v38 = vld [vmem:[%s0 + $0x44] sm:$0xf]
  %v39 = vld [vmem:[%s0 + $0x48] sm:$0xf]
  %v40 = vld [vmem:[%s0 + $0x4c] sm:$0xf]
  %v41 = vld [vmem:[%s0 + $0x50] sm:$0xf]
  %v42 = vld [vmem:[%s0 + $0x54] sm:$0xf]
  %v43 = vld [vmem:[%s0 + $0x58] sm:$0xf]
  %v44 = vld [vmem:[%s0 + $0x5c] sm:$0xf]
  %v45 = vld [vmem:[%s0 + $0x60] sm:$0xf]
  %v46 = vld [vmem:[%s0 + $0x64] sm:$0xf]
  %v47 = vld [vmem:[%s0 + $0x68] sm:$0xf]
  %v48 = vld [vmem:[%s0 + $0x6c] sm:$0xf]
  %v49 = vld [vmem:[%s0 + $0x70] sm:$0xf]
  %v50 = vld [vmem:[%s0 + $0x74] sm:$0xf]
  %v51 = vld [vmem:[%s0 + $0x78] sm:$0xf]
  %v52 = vld [vmem:[%s0 + $0x7c] sm:$0xf]
  %v53 = vld [vmem:[%s0 + $0x80] sm:$0xf]
  %v54 = vld [vmem:[%s0 + $0x84] sm:$0xf]
  %v55 = vld [vmem:[%s0 + $0x88] sm:$0xf]
  %v56 = vld [vmem:[%s0 + $0x8c] sm:$0xf]
  %v57 = vld [vmem:[%s0 + $0x90] sm:$0xf]
  %v58 = vld [vmem:[%s0 + $0x94] sm:$0xf]
  %v59 = vld [vmem:[%s0 + $0x98] sm:$0xf]
  %v60 = vld [vmem:[%s0 + $0x9c] sm:$0xf]
  %v61 = vld [vmem:[%s0 + $0xa0] sm:$0xf]
  %v62 = vld [vmem:[%s0 + $0xa4] sm:$0xf]
  %v63 = vld [vmem:[%s0 + $0xa8] sm:$0xf]
  %v64 = vld [vmem:[%s0 + $0xac] sm:$0xf]
  %v65 = vld [vmem:[%s0 + $0xb0] sm:$0xf]
  %v66 = vld [vmem:[%s0 + $0xb4] sm:$0xf]
  %v67 = vld [vmem:[%s0 + $0xb8] sm:$0xf]
  %v68 = vld [vmem:[%s0 + $0xbc] sm:$0xf]
  %v69 = vld [vmem:[%s0 + $0xc0] sm:$0xf]
  %v70 = vld [vmem:[%s0 + $0xc4] sm:$0xf]
  %v71 = vld [vmem:[%s0 + $0xc8] sm:$0xf]
  %v72 = vld [vmem:[%s0 + $0xcc] sm:$0xf]
  %v73 = vld [vmem:[%s0 + $0xd0] sm:$0xf]
  %v74 = vld [vmem:[%s0 + $0xd4] sm:$0xf]
  %v75 = vld [vmem:[%s0 + $0xd8] sm:$0xf]
  %v76 = vld [vmem:[%s0 + $0xdc] sm:$0xf]
  %v77 = vld [vmem:[%s0 + $0xe0] sm:$0xf]
  %v78 = vld [vmem:[%s0 + $0xe4] sm:$0xf]
  %v79 = vld [vmem:[%s0 + $0xe8] sm:$0xf]
  %v80 = vld [vmem:[%s0 + $0xec] sm:$0xf]
  %v81 = vld [vmem:[%s0 + $0xf0] sm:$0xf]
  %v82 = vld [vmem:[%s0 + $0xf4] sm:$0xf]
  %v83 = vld [vmem:[%s0 + $0xf8] sm:$0xf]
  %v84 = vld [vmem:[%s0 + $0xfc] sm:$0xf]
  %v85 = vld [vmem:[%s1] sm:$0xff]
  %v86 = vld [vmem:[%s1 + $0x8] sm:$0xff]
  %v87 = vld [vmem:[%s1 + $0x10] sm:$0xff]
  %v88 = vld [vmem:[%s1 + $0x18] sm:$0xff]
  %v89 = vld [vmem:[%s1 + $0x20] sm:$0xff]
  %v90 = vld [vmem:[%s1 + $0x28] sm:$0xff]
  %v91 = vld [vmem:[%s1 + $0x30] sm:$0xff]
  %v92 = vld [vmem:[%s1 + $0x38] sm:$0xff]
  %v93 = vld [vmem:[%s2] sm:$0x3]
  %v95 = vlaneseq
  %v96 = vshrl.u32 %v95, 7
  %v97 = vsub.s32 0, %v96
  %v98 = vrot.slane %v93, %v97
  %v99 = vlaneseq
  %v100 = vshrl.u32 %v99, 7
  %v101 = vsub.s32 1, %v100
  %v102 = vrot.slane %v93, %v101
  %v169 = vunpack.c.l.b16 %v21
  %v170 = vunpack.c.l.b16 %v22
  %v171 = vunpack.c.l.b16 %v23
  %v172 = vunpack.c.l.b16 %v24
  %v173 = vunpack.c.l.b16 %v25
  %v174 = vunpack.c.l.b16 %v26
  %v175 = vunpack.c.l.b16 %v27
  %v176 = vunpack.c.l.b16 %v28
  %v177 = vunpack.c.l.b16 %v29
  %v178 = vunpack.c.l.b16 %v30
  %v179 = vunpack.c.l.b16 %v31
  %v180 = vunpack.c.l.b16 %v32
  %v181 = vunpack.c.l.b16 %v33
  %v182 = vunpack.c.l.b16 %v34
  %v183 = vunpack.c.l.b16 %v35
  %v184 = vunpack.c.l.b16 %v36
  %v185 = vunpack.c.l.b16 %v37
  %v186 = vunpack.c.l.b16 %v38
  %v187 = vunpack.c.l.b16 %v39
  %v188 = vunpack.c.l.b16 %v40
  %v189 = vunpack.c.l.b16 %v41
  %v190 = vunpack.c.l.b16 %v42
  %v191 = vunpack.c.l.b16 %v43
  %v192 = vunpack.c.l.b16 %v44
  %v193 = vunpack.c.l.b16 %v45
  %v194 = vunpack.c.l.b16 %v46
  %v195 = vunpack.c.l.b16 %v47
  %v196 = vunpack.c.l.b16 %v48
  %v197 = vunpack.c.l.b16 %v49
  %v198 = vunpack.c.l.b16 %v50
  %v199 = vunpack.c.l.b16 %v51
  %v200 = vunpack.c.l.b16 %v52
  %v201 = vunpack.c.l.b16 %v53
  %v202 = vunpack.c.l.b16 %v54
  %v203 = vunpack.c.l.b16 %v55
  %v204 = vunpack.c.l.b16 %v56
  %v205 = vunpack.c.l.b16 %v57
  %v206 = vunpack.c.l.b16 %v58
  %v207 = vunpack.c.l.b16 %v59
  %v208 = vunpack.c.l.b16 %v60
  %v209 = vunpack.c.l.b16 %v61
  %v210 = vunpack.c.l.b16 %v62
  %v211 = vunpack.c.l.b16 %v63
  %v212 = vunpack.c.l.b16 %v64
  %v213 = vunpack.c.l.b16 %v65
  %v214 = vunpack.c.l.b16 %v66
  %v215 = vunpack.c.l.b16 %v67
  %v216 = vunpack.c.l.b16 %v68
  %v217 = vunpack.c.l.b16 %v69
  %v218 = vunpack.c.l.b16 %v70
  %v219 = vunpack.c.l.b16 %v71
  %v220 = vunpack.c.l.b16 %v72
  %v221 = vunpack.c.l.b16 %v73
  %v222 = vunpack.c.l.b16 %v74
  %v223 = vunpack.c.l.b16 %v75
  %v224 = vunpack.c.l.b16 %v76
  %v225 = vunpack.c.l.b16 %v77
  %v226 = vunpack.c.l.b16 %v78
  %v227 = vunpack.c.l.b16 %v79
  %v228 = vunpack.c.l.b16 %v80
  %v229 = vunpack.c.l.b16 %v81
  %v230 = vunpack.c.l.b16 %v82
  %v231 = vunpack.c.l.b16 %v83
  %v232 = vunpack.c.l.b16 %v84
  %v233 = vpack.c.b16 %v170, %v169
  %v234 = vpack.c.b16 %v172, %v171
  %v235 = vpack.c.b16 %v174, %v173
  %v236 = vpack.c.b16 %v176, %v175
  %v237 = vpack.c.b16 %v178, %v177
  %v238 = vpack.c.b16 %v180, %v179
  %v239 = vpack.c.b16 %v182, %v181
  %v240 = vpack.c.b16 %v184, %v183
  %v241 = vpack.c.b16 %v186, %v185
  %v242 = vpack.c.b16 %v188, %v187
  %v243 = vpack.c.b16 %v190, %v189
  %v244 = vpack.c.b16 %v192, %v191
  %v245 = vpack.c.b16 %v194, %v193
  %v246 = vpack.c.b16 %v196, %v195
  %v247 = vpack.c.b16 %v198, %v197
  %v248 = vpack.c.b16 %v200, %v199
  %v249 = vpack.c.b16 %v202, %v201
  %v250 = vpack.c.b16 %v204, %v203
  %v251 = vpack.c.b16 %v206, %v205
  %v252 = vpack.c.b16 %v208, %v207
  %v253 = vpack.c.b16 %v210, %v209
  %v254 = vpack.c.b16 %v212, %v211
  %v255 = vpack.c.b16 %v214, %v213
  %v256 = vpack.c.b16 %v216, %v215
  %v257 = vpack.c.b16 %v218, %v217
  %v258 = vpack.c.b16 %v220, %v219
  %v259 = vpack.c.b16 %v222, %v221
  %v260 = vpack.c.b16 %v224, %v223
  %v261 = vpack.c.b16 %v226, %v225
  %v262 = vpack.c.b16 %v228, %v227
  %v263 = vpack.c.b16 %v230, %v229
  %v264 = vpack.c.b16 %v232, %v231
  %v273 = vunpack.c.l.b16 %v85
  %v274 = vunpack.c.h.b16 %v85
  %v275 = vunpack.c.l.b16 %v86
  %v276 = vunpack.c.h.b16 %v86
  %v277 = vunpack.c.l.b16 %v87
  %v278 = vunpack.c.h.b16 %v87
  %v279 = vunpack.c.l.b16 %v88
  %v280 = vunpack.c.h.b16 %v88
  %v281 = vunpack.c.l.b16 %v89
  %v282 = vunpack.c.h.b16 %v89
  %v283 = vunpack.c.l.b16 %v90
  %v284 = vunpack.c.h.b16 %v90
  %v285 = vunpack.c.l.b16 %v91
  %v286 = vunpack.c.h.b16 %v91
  %v287 = vunpack.c.l.b16 %v92
  %v288 = vunpack.c.h.b16 %v92
  %v289 = vpack.c.b16 %v275, %v273
  %v290 = vpack.c.b16 %v276, %v274
  %v291 = vpack.c.b16 %v279, %v277
  %v292 = vpack.c.b16 %v280, %v278
  %v293 = vpack.c.b16 %v283, %v281
  %v294 = vpack.c.b16 %v284, %v282
  %v295 = vpack.c.b16 %v287, %v285
  %v296 = vpack.c.b16 %v288, %v286
  %vm305 = vcmask 523264
  %v307 = vsel %vm305, %v233, 0
  %v310 = vsel %vm305, %v234, 0
  %v313 = vsel %vm305, %v235, 0
  %v316 = vsel %vm305, %v236, 0
  %v319 = vsel %vm305, %v237, 0
  %v322 = vsel %vm305, %v238, 0
  %v325 = vsel %vm305, %v239, 0
  %v328 = vsel %vm305, %v240, 0
  %v331 = vsel %vm305, %v241, 0
  %v334 = vsel %vm305, %v242, 0
  %v337 = vsel %vm305, %v243, 0
  %v340 = vsel %vm305, %v244, 0
  %v343 = vsel %vm305, %v245, 0
  %v346 = vsel %vm305, %v246, 0
  %v349 = vsel %vm305, %v247, 0
  %v352 = vsel %vm305, %v248, 0
  %v355 = vsel %vm305, %v249, 0
  %v358 = vsel %vm305, %v250, 0
  %v361 = vsel %vm305, %v251, 0
  %v364 = vsel %vm305, %v252, 0
  %v367 = vsel %vm305, %v253, 0
  %v370 = vsel %vm305, %v254, 0
  %v373 = vsel %vm305, %v255, 0
  %v376 = vsel %vm305, %v256, 0
  %v379 = vsel %vm305, %v257, 0
  %v382 = vsel %vm305, %v258, 0
  %v385 = vsel %vm305, %v259, 0
  %v388 = vsel %vm305, %v260, 0
  %v391 = vsel %vm305, %v261, 0
  %v394 = vsel %vm305, %v262, 0
  %v397 = vsel %vm305, %v263, 0
  %v400 = vsel %vm305, %v264, 0
  %402 = vmatprep.subr.bf16.mxu0 0
  %403 = vmatpush1.bf16.msra.mxu0 0
  %404 = vmatprep.subr.bf16.mxu0 0
  %405 = vmatpush1.bf16.msra.mxu0 0
  %406 = vmatprep.subr.bf16.mxu0 0
  %407 = vmatpush1.bf16.msra.mxu0 0
  %408 = vmatprep.subr.bf16.mxu0 0
  %409 = vmatpush1.bf16.msra.mxu0 0
  %410 = vmatprep.subr.bf16.mxu0 %v296
  %411 = vmatpush1.bf16.msra.mxu0 %v295
  %412 = vmatprep.subr.bf16.mxu0 %v294
  %413 = vmatpush1.bf16.msra.mxu0 %v293
  %414 = vmatprep.subr.bf16.mxu0 %v292
  %415 = vmatpush1.bf16.msra.mxu0 %v291
  %416 = vmatprep.subr.bf16.mxu0 %v290
  %417 = vmatpush1.bf16.msra.mxu0 %v289
  %418 = vmatprep.subr.bf16.mxu0 0
  %419 = vmatpush2.bf16.msra.mxu0 0
  %420 = vmatprep.subr.bf16.mxu0 0
  %421 = vmatpush2.bf16.msra.mxu0 0
  %422 = vmatprep.subr.bf16.mxu0 0
  %423 = vmatpush2.bf16.msra.mxu0 0
  %424 = vmatprep.subr.bf16.mxu0 0
  %425 = vmatpush2.bf16.msra.mxu0 0
  %426 = vmatprep.subr.bf16.mxu0 0
  %427 = vmatpush2.bf16.msra.mxu0 0
  %428 = vmatprep.subr.bf16.mxu0 0
  %429 = vmatpush2.bf16.msra.mxu0 0
  %430 = vmatprep.subr.bf16.mxu0 0
  %431 = vmatpush2.bf16.msra.mxu0 0
  %432 = vmatprep.subr.bf16.mxu0 0
  %433 = vmatpush2.bf16.msra.mxu0 0
  %434 = vmatprep.mubr.bf16.mxu0 0
  %435 = vmatmul.mubr.bf16.gmra.mxu0 %v307
  %v436 = vpop.f32.mrf.mxu0
  %v437 = vadd.f32 %v98, %v436
  %v438 = vpop.f32.mrf.mxu0
  %v439 = vadd.f32 %v102, %v438
  %v440 = vpop.f32.mrf.mxu0
  %v441 = vadd.f32 %v98, %v440
  %v442 = vpop.f32.mrf.mxu0
  %v443 = vadd.f32 %v102, %v442
  %444 = vmatprep.mubr.bf16.mxu0 0
  %445 = vmatmul.mubr.bf16.gmra.mxu0 %v310
  %v446 = vpop.f32.mrf.mxu0
  %v447 = vadd.f32 %v98, %v446
  %v448 = vpop.f32.mrf.mxu0
  %v449 = vadd.f32 %v102, %v448
  %v450 = vpop.f32.mrf.mxu0
  %v451 = vadd.f32 %v98, %v450
  %v452 = vpop.f32.mrf.mxu0
  %v453 = vadd.f32 %v102, %v452
  %454 = vmatprep.mubr.bf16.mxu0 0
  %455 = vmatmul.mubr.bf16.gmra.mxu0 %v313
  %v456 = vpop.f32.mrf.mxu0
  %v457 = vadd.f32 %v98, %v456
  %v458 = vpop.f32.mrf.mxu0
  %v459 = vadd.f32 %v102, %v458
  %v460 = vpop.f32.mrf.mxu0
  %v461 = vadd.f32 %v98, %v460
  %v462 = vpop.f32.mrf.mxu0
  %v463 = vadd.f32 %v102, %v462
  %464 = vmatprep.mubr.bf16.mxu0 0
  %465 = vmatmul.mubr.bf16.gmra.mxu0 %v316
  %v466 = vpop.f32.mrf.mxu0
  %v467 = vadd.f32 %v98, %v466
  %v468 = vpop.f32.mrf.mxu0
  %v469 = vadd.f32 %v102, %v468
  %v470 = vpop.f32.mrf.mxu0
  %v471 = vadd.f32 %v98, %v470
  %v472 = vpop.f32.mrf.mxu0
  %v473 = vadd.f32 %v102, %v472
  %474 = vmatprep.mubr.bf16.mxu0 0
  %475 = vmatmul.mubr.bf16.gmra.mxu0 %v319
  %v476 = vpop.f32.mrf.mxu0
  %v477 = vadd.f32 %v98, %v476
  %v478 = vpop.f32.mrf.mxu0
  %v479 = vadd.f32 %v102, %v478
  %v480 = vpop.f32.mrf.mxu0
  %v481 = vadd.f32 %v98, %v480
  %v482 = vpop.f32.mrf.mxu0
  %v483 = vadd.f32 %v102, %v482
  %484 = vmatprep.mubr.bf16.mxu0 0
  %485 = vmatmul.mubr.bf16.gmra.mxu0 %v322
  %v486 = vpop.f32.mrf.mxu0
  %v487 = vadd.f32 %v98, %v486
  %v488 = vpop.f32.mrf.mxu0
  %v489 = vadd.f32 %v102, %v488
  %v490 = vpop.f32.mrf.mxu0
  %v491 = vadd.f32 %v98, %v490
  %v492 = vpop.f32.mrf.mxu0
  %v493 = vadd.f32 %v102, %v492
  %494 = vmatprep.mubr.bf16.mxu0 0
  %495 = vmatmul.mubr.bf16.gmra.mxu0 %v325
  %v496 = vpop.f32.mrf.mxu0
  %v497 = vadd.f32 %v98, %v496
  %v498 = vpop.f32.mrf.mxu0
  %v499 = vadd.f32 %v102, %v498
  %v500 = vpop.f32.mrf.mxu0
  %v501 = vadd.f32 %v98, %v500
  %v502 = vpop.f32.mrf.mxu0
  %v503 = vadd.f32 %v102, %v502
  %504 = vmatprep.mubr.bf16.mxu0 0
  %505 = vmatmul.mubr.bf16.gmra.mxu0 %v328
  %v506 = vpop.f32.mrf.mxu0
  %v507 = vadd.f32 %v98, %v506
  %v508 = vpop.f32.mrf.mxu0
  %v509 = vadd.f32 %v102, %v508
  %v510 = vpop.f32.mrf.mxu0
  %v511 = vadd.f32 %v98, %v510
  %v512 = vpop.f32.mrf.mxu0
  %v513 = vadd.f32 %v102, %v512
  %514 = vmatprep.mubr.bf16.mxu0 0
  %515 = vmatmul.mubr.bf16.gmra.mxu0 %v331
  %v516 = vpop.f32.mrf.mxu0
  %v517 = vadd.f32 %v98, %v516
  %v518 = vpop.f32.mrf.mxu0
  %v519 = vadd.f32 %v102, %v518
  %v520 = vpop.f32.mrf.mxu0
  %v521 = vadd.f32 %v98, %v520
  %v522 = vpop.f32.mrf.mxu0
  %v523 = vadd.f32 %v102, %v522
  %524 = vmatprep.mubr.bf16.mxu0 0
  %525 = vmatmul.mubr.bf16.gmra.mxu0 %v334
  %v526 = vpop.f32.mrf.mxu0
  %v527 = vadd.f32 %v98, %v526
  %v528 = vpop.f32.mrf.mxu0
  %v529 = vadd.f32 %v102, %v528
  %v530 = vpop.f32.mrf.mxu0
  %v531 = vadd.f32 %v98, %v530
  %v532 = vpop.f32.mrf.mxu0
  %v533 = vadd.f32 %v102, %v532
  %534 = vmatprep.mubr.bf16.mxu0 0
  %535 = vmatmul.mubr.bf16.gmra.mxu0 %v337
  %v536 = vpop.f32.mrf.mxu0
  %v537 = vadd.f32 %v98, %v536
  %v538 = vpop.f32.mrf.mxu0
  %v539 = vadd.f32 %v102, %v538
  %v540 = vpop.f32.mrf.mxu0
  %v541 = vadd.f32 %v98, %v540
  %v542 = vpop.f32.mrf.mxu0
  %v543 = vadd.f32 %v102, %v542
  %544 = vmatprep.mubr.bf16.mxu0 0
  %545 = vmatmul.mubr.bf16.gmra.mxu0 %v340
  %v546 = vpop.f32.mrf.mxu0
  %v547 = vadd.f32 %v98, %v546
  %v548 = vpop.f32.mrf.mxu0
  %v549 = vadd.f32 %v102, %v548
  %v550 = vpop.f32.mrf.mxu0
  %v551 = vadd.f32 %v98, %v550
  %v552 = vpop.f32.mrf.mxu0
  %v553 = vadd.f32 %v102, %v552
  %554 = vmatprep.mubr.bf16.mxu0 0
  %555 = vmatmul.mubr.bf16.gmra.mxu0 %v343
  %v556 = vpop.f32.mrf.mxu0
  %v557 = vadd.f32 %v98, %v556
  %v558 = vpop.f32.mrf.mxu0
  %v559 = vadd.f32 %v102, %v558
  %v560 = vpop.f32.mrf.mxu0
  %v561 = vadd.f32 %v98, %v560
  %v562 = vpop.f32.mrf.mxu0
  %v563 = vadd.f32 %v102, %v562
  %564 = vmatprep.mubr.bf16.mxu0 0
  %565 = vmatmul.mubr.bf16.gmra.mxu0 %v346
  %v566 = vpop.f32.mrf.mxu0
  %v567 = vadd.f32 %v98, %v566
  %v568 = vpop.f32.mrf.mxu0
  %v569 = vadd.f32 %v102, %v568
  %v570 = vpop.f32.mrf.mxu0
  %v571 = vadd.f32 %v98, %v570
  %v572 = vpop.f32.mrf.mxu0
  %v573 = vadd.f32 %v102, %v572
  %574 = vmatprep.mubr.bf16.mxu0 0
  %575 = vmatmul.mubr.bf16.gmra.mxu0 %v349
  %v576 = vpop.f32.mrf.mxu0
  %v577 = vadd.f32 %v98, %v576
  %v578 = vpop.f32.mrf.mxu0
  %v579 = vadd.f32 %v102, %v578
  %v580 = vpop.f32.mrf.mxu0
  %v581 = vadd.f32 %v98, %v580
  %v582 = vpop.f32.mrf.mxu0
  %v583 = vadd.f32 %v102, %v582
  %584 = vmatprep.mubr.bf16.mxu0 0
  %585 = vmatmul.mubr.bf16.gmra.mxu0 %v352
  %v586 = vpop.f32.mrf.mxu0
  %v587 = vadd.f32 %v98, %v586
  %v588 = vpop.f32.mrf.mxu0
  %v589 = vadd.f32 %v102, %v588
  %v590 = vpop.f32.mrf.mxu0
  %v591 = vadd.f32 %v98, %v590
  %v592 = vpop.f32.mrf.mxu0
  %v593 = vadd.f32 %v102, %v592
  %594 = vmatprep.mubr.bf16.mxu0 0
  %595 = vmatmul.mubr.bf16.gmra.mxu0 %v355
  %v596 = vpop.f32.mrf.mxu0
  %v597 = vadd.f32 %v98, %v596
  %v598 = vpop.f32.mrf.mxu0
  %v599 = vadd.f32 %v102, %v598
  %v600 = vpop.f32.mrf.mxu0
  %v601 = vadd.f32 %v98, %v600
  %v602 = vpop.f32.mrf.mxu0
  %v603 = vadd.f32 %v102, %v602
  %604 = vmatprep.mubr.bf16.mxu0 0
  %605 = vmatmul.mubr.bf16.gmra.mxu0 %v358
  %v606 = vpop.f32.mrf.mxu0
  %v607 = vadd.f32 %v98, %v606
  %v608 = vpop.f32.mrf.mxu0
  %v609 = vadd.f32 %v102, %v608
  %v610 = vpop.f32.mrf.mxu0
  %v611 = vadd.f32 %v98, %v610
  %v612 = vpop.f32.mrf.mxu0
  %v613 = vadd.f32 %v102, %v612
  %614 = vmatprep.mubr.bf16.mxu0 0
  %615 = vmatmul.mubr.bf16.gmra.mxu0 %v361
  %v616 = vpop.f32.mrf.mxu0
  %v617 = vadd.f32 %v98, %v616
  %v618 = vpop.f32.mrf.mxu0
  %v619 = vadd.f32 %v102, %v618
  %v620 = vpop.f32.mrf.mxu0
  %v621 = vadd.f32 %v98, %v620
  %v622 = vpop.f32.mrf.mxu0
  %v623 = vadd.f32 %v102, %v622
  %624 = vmatprep.mubr.bf16.mxu0 0
  %625 = vmatmul.mubr.bf16.gmra.mxu0 %v364
  %v626 = vpop.f32.mrf.mxu0
  %v627 = vadd.f32 %v98, %v626
  %v628 = vpop.f32.mrf.mxu0
  %v629 = vadd.f32 %v102, %v628
  %v630 = vpop.f32.mrf.mxu0
  %v631 = vadd.f32 %v98, %v630
  %v632 = vpop.f32.mrf.mxu0
  %v633 = vadd.f32 %v102, %v632
  %634 = vmatprep.mubr.bf16.mxu0 0
  %635 = vmatmul.mubr.bf16.gmra.mxu0 %v367
  %v636 = vpop.f32.mrf.mxu0
  %v637 = vadd.f32 %v98, %v636
  %v638 = vpop.f32.mrf.mxu0
  %v639 = vadd.f32 %v102, %v638
  %v640 = vpop.f32.mrf.mxu0
  %v641 = vadd.f32 %v98, %v640
  %v642 = vpop.f32.mrf.mxu0
  %v643 = vadd.f32 %v102, %v642
  %644 = vmatprep.mubr.bf16.mxu0 0
  %645 = vmatmul.mubr.bf16.gmra.mxu0 %v370
  %v646 = vpop.f32.mrf.mxu0
  %v647 = vadd.f32 %v98, %v646
  %v648 = vpop.f32.mrf.mxu0
  %v649 = vadd.f32 %v102, %v648
  %v650 = vpop.f32.mrf.mxu0
  %v651 = vadd.f32 %v98, %v650
  %v652 = vpop.f32.mrf.mxu0
  %v653 = vadd.f32 %v102, %v652
  %654 = vmatprep.mubr.bf16.mxu0 0
  %655 = vmatmul.mubr.bf16.gmra.mxu0 %v373
  %v656 = vpop.f32.mrf.mxu0
  %v657 = vadd.f32 %v98, %v656
  %v658 = vpop.f32.mrf.mxu0
  %v659 = vadd.f32 %v102, %v658
  %v660 = vpop.f32.mrf.mxu0
  %v661 = vadd.f32 %v98, %v660
  %v662 = vpop.f32.mrf.mxu0
  %v663 = vadd.f32 %v102, %v662
  %664 = vmatprep.mubr.bf16.mxu0 0
  %665 = vmatmul.mubr.bf16.gmra.mxu0 %v376
  %v666 = vpop.f32.mrf.mxu0
  %v667 = vadd.f32 %v98, %v666
  %v668 = vpop.f32.mrf.mxu0
  %v669 = vadd.f32 %v102, %v668
  %v670 = vpop.f32.mrf.mxu0
  %v671 = vadd.f32 %v98, %v670
  %v672 = vpop.f32.mrf.mxu0
  %v673 = vadd.f32 %v102, %v672
  %674 = vmatprep.mubr.bf16.mxu0 0
  %675 = vmatmul.mubr.bf16.gmra.mxu0 %v379
  %v676 = vpop.f32.mrf.mxu0
  %v677 = vadd.f32 %v98, %v676
  %v678 = vpop.f32.mrf.mxu0
  %v679 = vadd.f32 %v102, %v678
  %v680 = vpop.f32.mrf.mxu0
  %v681 = vadd.f32 %v98, %v680
  %v682 = vpop.f32.mrf.mxu0
  %v683 = vadd.f32 %v102, %v682
  %684 = vmatprep.mubr.bf16.mxu0 0
  %685 = vmatmul.mubr.bf16.gmra.mxu0 %v382
  %v686 = vpop.f32.mrf.mxu0
  %v687 = vadd.f32 %v98, %v686
  %v688 = vpop.f32.mrf.mxu0
  %v689 = vadd.f32 %v102, %v688
  %v690 = vpop.f32.mrf.mxu0
  %v691 = vadd.f32 %v98, %v690
  %v692 = vpop.f32.mrf.mxu0
  %v693 = vadd.f32 %v102, %v692
  %694 = vmatprep.mubr.bf16.mxu0 0
  %695 = vmatmul.mubr.bf16.gmra.mxu0 %v385
  %v696 = vpop.f32.mrf.mxu0
  %v697 = vadd.f32 %v98, %v696
  %v698 = vpop.f32.mrf.mxu0
  %v699 = vadd.f32 %v102, %v698
  %v700 = vpop.f32.mrf.mxu0
  %v701 = vadd.f32 %v98, %v700
  %v702 = vpop.f32.mrf.mxu0
  %v703 = vadd.f32 %v102, %v702
  %704 = vmatprep.mubr.bf16.mxu0 0
  %705 = vmatmul.mubr.bf16.gmra.mxu0 %v388
  %v706 = vpop.f32.mrf.mxu0
  %v707 = vadd.f32 %v98, %v706
  %v708 = vpop.f32.mrf.mxu0
  %v709 = vadd.f32 %v102, %v708
  %v710 = vpop.f32.mrf.mxu0
  %v711 = vadd.f32 %v98, %v710
  %v712 = vpop.f32.mrf.mxu0
  %v713 = vadd.f32 %v102, %v712
  %714 = vmatprep.mubr.bf16.mxu0 0
  %715 = vmatmul.mubr.bf16.gmra.mxu0 %v391
  %v716 = vpop.f32.mrf.mxu0
  %v717 = vadd.f32 %v98, %v716
  %v718 = vpop.f32.mrf.mxu0
  %v719 = vadd.f32 %v102, %v718
  %v720 = vpop.f32.mrf.mxu0
  %v721 = vadd.f32 %v98, %v720
  %v722 = vpop.f32.mrf.mxu0
  %v723 = vadd.f32 %v102, %v722
  %724 = vmatprep.mubr.bf16.mxu0 0
  %725 = vmatmul.mubr.bf16.gmra.mxu0 %v394
  %v726 = vpop.f32.mrf.mxu0
  %v727 = vadd.f32 %v98, %v726
  %v728 = vpop.f32.mrf.mxu0
  %v729 = vadd.f32 %v102, %v728
  %v730 = vpop.f32.mrf.mxu0
  %v731 = vadd.f32 %v98, %v730
  %v732 = vpop.f32.mrf.mxu0
  %v733 = vadd.f32 %v102, %v732
  %734 = vmatprep.mubr.bf16.mxu0 0
  %735 = vmatmul.mubr.bf16.gmra.mxu0 %v397
  %v736 = vpop.f32.mrf.mxu0
  %v737 = vadd.f32 %v98, %v736
  %v738 = vpop.f32.mrf.mxu0
  %v739 = vadd.f32 %v102, %v738
  %v740 = vpop.f32.mrf.mxu0
  %v741 = vadd.f32 %v98, %v740
  %v742 = vpop.f32.mrf.mxu0
  %v743 = vadd.f32 %v102, %v742
  %744 = vmatprep.mubr.bf16.mxu0 0
  %745 = vmatmul.mubr.bf16.gmra.mxu0 %v400
  %v746 = vpop.f32.mrf.mxu0
  %v747 = vadd.f32 %v98, %v746
  %v748 = vpop.f32.mrf.mxu0
  %v749 = vadd.f32 %v102, %v748
  %v750 = vpop.f32.mrf.mxu0
  %v751 = vadd.f32 %v98, %v750
  %v752 = vpop.f32.mrf.mxu0
  %v753 = vadd.f32 %v102, %v752
  %754 = vdwg.mxu0
  %v755 = vmax.f32 %v437, 0.0
  %v756 = vmax.f32 %v439, 0.0
  %v757 = vmax.f32 %v441, 0.0
  %v758 = vmax.f32 %v443, 0.0
  %v759 = vmax.f32 %v447, 0.0
  %v760 = vmax.f32 %v449, 0.0
  %v761 = vmax.f32 %v451, 0.0
  %v762 = vmax.f32 %v453, 0.0
  %v763 = vmax.f32 %v457, 0.0
  %v764 = vmax.f32 %v459, 0.0
  %v765 = vmax.f32 %v461, 0.0
  %v766 = vmax.f32 %v463, 0.0
  %v767 = vmax.f32 %v467, 0.0
  %v768 = vmax.f32 %v469, 0.0
  %v769 = vmax.f32 %v471, 0.0
  %v770 = vmax.f32 %v473, 0.0
  %v771 = vmax.f32 %v477, 0.0
  %v772 = vmax.f32 %v479, 0.0
  %v773 = vmax.f32 %v481, 0.0
  %v774 = vmax.f32 %v483, 0.0
  %v775 = vmax.f32 %v487, 0.0
  %v776 = vmax.f32 %v489, 0.0
  %v777 = vmax.f32 %v491, 0.0
  %v778 = vmax.f32 %v493, 0.0
  %v779 = vmax.f32 %v497, 0.0
  %v780 = vmax.f32 %v499, 0.0
  %v781 = vmax.f32 %v501, 0.0
  %v782 = vmax.f32 %v503, 0.0
  %v783 = vmax.f32 %v507, 0.0
  %v784 = vmax.f32 %v509, 0.0
  %v785 = vmax.f32 %v511, 0.0
  %v786 = vmax.f32 %v513, 0.0
  %v787 = vmax.f32 %v517, 0.0
  %v788 = vmax.f32 %v519, 0.0
  %v789 = vmax.f32 %v521, 0.0
  %v790 = vmax.f32 %v523, 0.0
  %v791 = vmax.f32 %v527, 0.0
  %v792 = vmax.f32 %v529, 0.0
  %v793 = vmax.f32 %v531, 0.0
  %v794 = vmax.f32 %v533, 0.0
  %v795 = vmax.f32 %v537, 0.0
  %v796 = vmax.f32 %v539, 0.0
  %v797 = vmax.f32 %v541, 0.0
  %v798 = vmax.f32 %v543, 0.0
  %v799 = vmax.f32 %v547, 0.0
  %v800 = vmax.f32 %v549, 0.0
  %v801 = vmax.f32 %v551, 0.0
  %v802 = vmax.f32 %v553, 0.0
  %v803 = vmax.f32 %v557, 0.0
  %v804 = vmax.f32 %v559, 0.0
  %v805 = vmax.f32 %v561, 0.0
  %v806 = vmax.f32 %v563, 0.0
  %v807 = vmax.f32 %v567, 0.0
  %v808 = vmax.f32 %v569, 0.0
  %v809 = vmax.f32 %v571, 0.0
  %v810 = vmax.f32 %v573, 0.0
  %v811 = vmax.f32 %v577, 0.0
  %v812 = vmax.f32 %v579, 0.0
  %v813 = vmax.f32 %v581, 0.0
  %v814 = vmax.f32 %v583, 0.0
  %v815 = vmax.f32 %v587, 0.0
  %v816 = vmax.f32 %v589, 0.0
  %v817 = vmax.f32 %v591, 0.0
  %v818 = vmax.f32 %v593, 0.0
  %v819 = vmax.f32 %v597, 0.0
  %v820 = vmax.f32 %v599, 0.0
  %v821 = vmax.f32 %v601, 0.0
  %v822 = vmax.f32 %v603, 0.0
  %v823 = vmax.f32 %v607, 0.0
  %v824 = vmax.f32 %v609, 0.0
  %v825 = vmax.f32 %v611, 0.0
  %v826 = vmax.f32 %v613, 0.0
  %v827 = vmax.f32 %v617, 0.0
  %v828 = vmax.f32 %v619, 0.0
  %v829 = vmax.f32 %v621, 0.0
  %v830 = vmax.f32 %v623, 0.0
  %v831 = vmax.f32 %v627, 0.0
  %v832 = vmax.f32 %v629, 0.0
  %v833 = vmax.f32 %v631, 0.0
  %v834 = vmax.f32 %v633, 0.0
  %v835 = vmax.f32 %v637, 0.0
  %v836 = vmax.f32 %v639, 0.0
  %v837 = vmax.f32 %v641, 0.0
  %v838 = vmax.f32 %v643, 0.0
  %v839 = vmax.f32 %v647, 0.0
  %v840 = vmax.f32 %v649, 0.0
  %v841 = vmax.f32 %v651, 0.0
  %v842 = vmax.f32 %v653, 0.0
  %v843 = vmax.f32 %v657, 0.0
  %v844 = vmax.f32 %v659, 0.0
  %v845 = vmax.f32 %v661, 0.0
  %v846 = vmax.f32 %v663, 0.0
  %v847 = vmax.f32 %v667, 0.0
  %v848 = vmax.f32 %v669, 0.0
  %v849 = vmax.f32 %v671, 0.0
  %v850 = vmax.f32 %v673, 0.0
  %v851 = vmax.f32 %v677, 0.0
  %v852 = vmax.f32 %v679, 0.0
  %v853 = vmax.f32 %v681, 0.0
  %v854 = vmax.f32 %v683, 0.0
  %v855 = vmax.f32 %v687, 0.0
  %v856 = vmax.f32 %v689, 0.0
  %v857 = vmax.f32 %v691, 0.0
  %v858 = vmax.f32 %v693, 0.0
  %v859 = vmax.f32 %v697, 0.0
  %v860 = vmax.f32 %v699, 0.0
  %v861 = vmax.f32 %v701, 0.0
  %v862 = vmax.f32 %v703, 0.0
  %v863 = vmax.f32 %v707, 0.0
  %v864 = vmax.f32 %v709, 0.0
  %v865 = vmax.f32 %v711, 0.0
  %v866 = vmax.f32 %v713, 0.0
  %v867 = vmax.f32 %v717, 0.0
  %v868 = vmax.f32 %v719, 0.0
  %v869 = vmax.f32 %v721, 0.0
  %v870 = vmax.f32 %v723, 0.0
  %v871 = vmax.f32 %v727, 0.0
  %v872 = vmax.f32 %v729, 0.0
  %v873 = vmax.f32 %v731, 0.0
  %v874 = vmax.f32 %v733, 0.0
  %v875 = vmax.f32 %v737, 0.0
  %v876 = vmax.f32 %v739, 0.0
  %v877 = vmax.f32 %v741, 0.0
  %v878 = vmax.f32 %v743, 0.0
  %v879 = vmax.f32 %v747, 0.0
  %v880 = vmax.f32 %v749, 0.0
  %v881 = vmax.f32 %v751, 0.0
  %v882 = vmax.f32 %v753, 0.0
  %v883 = vpack.c.bf16 %v757, %v755
  %v884 = vpack.c.bf16 %v758, %v756
  %v885 = vpack.c.bf16 %v761, %v759
  %v886 = vpack.c.bf16 %v762, %v760
  %v887 = vpack.c.bf16 %v765, %v763
  %v888 = vpack.c.bf16 %v766, %v764
  %v889 = vpack.c.bf16 %v769, %v767
  %v890 = vpack.c.bf16 %v770, %v768
  %v891 = vpack.c.bf16 %v773, %v771
  %v892 = vpack.c.bf16 %v774, %v772
  %v893 = vpack.c.bf16 %v777, %v775
  %v894 = vpack.c.bf16 %v778, %v776
  %v895 = vpack.c.bf16 %v781, %v779
  %v896 = vpack.c.bf16 %v782, %v780
  %v897 = vpack.c.bf16 %v785, %v783
  %v898 = vpack.c.bf16 %v786, %v784
  %v899 = vpack.c.bf16 %v789, %v787
  %v900 = vpack.c.bf16 %v790, %v788
  %v901 = vpack.c.bf16 %v793, %v791
  %v902 = vpack.c.bf16 %v794, %v792
  %v903 = vpack.c.bf16 %v797, %v795
  %v904 = vpack.c.bf16 %v798, %v796
  %v905 = vpack.c.bf16 %v801, %v799
  %v906 = vpack.c.bf16 %v802, %v800
  %v907 = vpack.c.bf16 %v805, %v803
  %v908 = vpack.c.bf16 %v806, %v804
  %v909 = vpack.c.bf16 %v809, %v807
  %v910 = vpack.c.bf16 %v810, %v808
  %v911 = vpack.c.bf16 %v813, %v811
  %v912 = vpack.c.bf16 %v814, %v812
  %v913 = vpack.c.bf16 %v817, %v815
  %v914 = vpack.c.bf16 %v818, %v816
  %v915 = vpack.c.bf16 %v821, %v819
  %v916 = vpack.c.bf16 %v822, %v820
  %v917 = vpack.c.bf16 %v825, %v823
  %v918 = vpack.c.bf16 %v826, %v824
  %v919 = vpack.c.bf16 %v829, %v827
  %v920 = vpack.c.bf16 %v830, %v828
  %v921 = vpack.c.bf16 %v833, %v831
  %v922 = vpack.c.bf16 %v834, %v832
  %v923 = vpack.c.bf16 %v837, %v835
  %v924 = vpack.c.bf16 %v838, %v836
  %v925 = vpack.c.bf16 %v841, %v839
  %v926 = vpack.c.bf16 %v842, %v840
  %v927 = vpack.c.bf16 %v845, %v843
  %v928 = vpack.c.bf16 %v846, %v844
  %v929 = vpack.c.bf16 %v849, %v847
  %v930 = vpack.c.bf16 %v850, %v848
  %v931 = vpack.c.bf16 %v853, %v851
  %v932 = vpack.c.bf16 %v854, %v852
  %v933 = vpack.c.bf16 %v857, %v855
  %v934 = vpack.c.bf16 %v858, %v856
  %v935 = vpack.c.bf16 %v861, %v859
  %v936 = vpack.c.bf16 %v862, %v860
  %v937 = vpack.c.bf16 %v865, %v863
  %v938 = vpack.c.bf16 %v866, %v864
  %v939 = vpack.c.bf16 %v869, %v867
  %v940 = vpack.c.bf16 %v870, %v868
  %v941 = vpack.c.bf16 %v873, %v871
  %v942 = vpack.c.bf16 %v874, %v872
  %v943 = vpack.c.bf16 %v877, %v875
  %v944 = vpack.c.bf16 %v878, %v876
  %v945 = vpack.c.bf16 %v881, %v879
  %v946 = vpack.c.bf16 %v882, %v880
  %v947 = vld [vmem:[%s3] sm:$0xf]
  %v948 = vld [vmem:[%s3 + $0x4] sm:$0xf]
  %v949 = vld [vmem:[%s3 + $0x8] sm:$0xf]
  %v950 = vld [vmem:[%s3 + $0xc] sm:$0xf]
  %v951 = vld [vmem:[%s3 + $0x10] sm:$0xf]
  %v952 = vld [vmem:[%s3 + $0x14] sm:$0xf]
  %v953 = vld [vmem:[%s3 + $0x18] sm:$0xf]
  %v954 = vld [vmem:[%s3 + $0x1c] sm:$0xf]
  %v955 = vld [vmem:[%s3 + $0x20] sm:$0xf]
  %v956 = vld [vmem:[%s3 + $0x24] sm:$0xf]
  %v957 = vld [vmem:[%s3 + $0x28] sm:$0xf]
  %v958 = vld [vmem:[%s3 + $0x2c] sm:$0xf]
  %v959 = vld [vmem:[%s3 + $0x30] sm:$0xf]
  %v960 = vld [vmem:[%s3 + $0x34] sm:$0xf]
  %v961 = vld [vmem:[%s3 + $0x38] sm:$0xf]
  %v962 = vld [vmem:[%s3 + $0x3c] sm:$0xf]
  %v963 = vld [vmem:[%s3 + $0x40] sm:$0xf]
  %v964 = vld [vmem:[%s3 + $0x44] sm:$0xf]
  %v965 = vld [vmem:[%s3 + $0x48] sm:$0xf]
  %v966 = vld [vmem:[%s3 + $0x4c] sm:$0xf]
  %v967 = vld [vmem:[%s3 + $0x50] sm:$0xf]
  %v968 = vld [vmem:[%s3 + $0x54] sm:$0xf]
  %v969 = vld [vmem:[%s3 + $0x58] sm:$0xf]
  %v970 = vld [vmem:[%s3 + $0x5c] sm:$0xf]
  %v971 = vld [vmem:[%s3 + $0x60] sm:$0xf]
  %v972 = vld [vmem:[%s3 + $0x64] sm:$0xf]
  %v973 = vld [vmem:[%s3 + $0x68] sm:$0xf]
  %v974 = vld [vmem:[%s3 + $0x6c] sm:$0xf]
  %v975 = vld [vmem:[%s3 + $0x70] sm:$0xf]
  %v976 = vld [vmem:[%s3 + $0x74] sm:$0xf]
  %v977 = vld [vmem:[%s3 + $0x78] sm:$0xf]
  %v978 = vld [vmem:[%s3 + $0x7c] sm:$0xf]
  %v979 = vld [vmem:[%s4] sm:$0x1]
  %v981 = vlaneseq
  %v982 = vshrl.u32 %v981, 7
  %v983 = vsub.s32 0, %v982
  %v984 = vrot.slane %v979, %v983
  %v1018 = vunpack.c.l.b16 %v947
  %v1019 = vunpack.c.l.b16 %v948
  %v1020 = vunpack.c.l.b16 %v949
  %v1021 = vunpack.c.l.b16 %v950
  %v1022 = vunpack.c.l.b16 %v951
  %v1023 = vunpack.c.l.b16 %v952
  %v1024 = vunpack.c.l.b16 %v953
  %v1025 = vunpack.c.l.b16 %v954
  %v1026 = vunpack.c.l.b16 %v955
  %v1027 = vunpack.c.l.b16 %v956
  %v1028 = vunpack.c.l.b16 %v957
  %v1029 = vunpack.c.l.b16 %v958
  %v1030 = vunpack.c.l.b16 %v959
  %v1031 = vunpack.c.l.b16 %v960
  %v1032 = vunpack.c.l.b16 %v961
  %v1033 = vunpack.c.l.b16 %v962
  %v1034 = vunpack.c.l.b16 %v963
  %v1035 = vunpack.c.l.b16 %v964
  %v1036 = vunpack.c.l.b16 %v965
  %v1037 = vunpack.c.l.b16 %v966
  %v1038 = vunpack.c.l.b16 %v967
  %v1039 = vunpack.c.l.b16 %v968
  %v1040 = vunpack.c.l.b16 %v969
  %v1041 = vunpack.c.l.b16 %v970
  %v1042 = vunpack.c.l.b16 %v971
  %v1043 = vunpack.c.l.b16 %v972
  %v1044 = vunpack.c.l.b16 %v973
  %v1045 = vunpack.c.l.b16 %v974
  %v1046 = vunpack.c.l.b16 %v975
  %v1047 = vunpack.c.l.b16 %v976
  %v1048 = vunpack.c.l.b16 %v977
  %v1049 = vunpack.c.l.b16 %v978
  %v1050 = vpack.c.b16 %v1019, %v1018
  %v1051 = vpack.c.b16 %v1021, %v1020
  %v1052 = vpack.c.b16 %v1023, %v1022
  %v1053 = vpack.c.b16 %v1025, %v1024
  %v1054 = vpack.c.b16 %v1027, %v1026
  %v1055 = vpack.c.b16 %v1029, %v1028
  %v1056 = vpack.c.b16 %v1031, %v1030
  %v1057 = vpack.c.b16 %v1033, %v1032
  %v1058 = vpack.c.b16 %v1035, %v1034
  %v1059 = vpack.c.b16 %v1037, %v1036
  %v1060 = vpack.c.b16 %v1039, %v1038
  %v1061 = vpack.c.b16 %v1041, %v1040
  %v1062 = vpack.c.b16 %v1043, %v1042
  %v1063 = vpack.c.b16 %v1045, %v1044
  %v1064 = vpack.c.b16 %v1047, %v1046
  %v1065 = vpack.c.b16 %v1049, %v1048
  %1082 = vmatprep.subr.bf16.mxu0 0
  %1083 = vmatpush1.bf16.msra.mxu0 %v1057
  %1084 = vmatprep.subr.bf16.mxu0 0
  %1085 = vmatpush1.bf16.msra.mxu0 %v1056
  %1086 = vmatprep.subr.bf16.mxu0 0
  %1087 = vmatpush1.bf16.msra.mxu0 %v1055
  %1088 = vmatprep.subr.bf16.mxu0 0
  %1089 = vmatpush1.bf16.msra.mxu0 %v1054
  %1090 = vmatprep.subr.bf16.mxu0 0
  %1091 = vmatpush1.bf16.msra.mxu0 %v1053
  %1092 = vmatprep.subr.bf16.mxu0 0
  %1093 = vmatpush1.bf16.msra.mxu0 %v1052
  %1094 = vmatprep.subr.bf16.mxu0 0
  %1095 = vmatpush1.bf16.msra.mxu0 %v1051
  %1096 = vmatprep.subr.bf16.mxu0 0
  %1097 = vmatpush1.bf16.msra.mxu0 %v1050
  %1098 = vmatprep.subr.bf16.mxu0 0
  %1099 = vmatpush2.bf16.msra.mxu0 %v1065
  %1100 = vmatprep.subr.bf16.mxu0 0
  %1101 = vmatpush2.bf16.msra.mxu0 %v1064
  %1102 = vmatprep.subr.bf16.mxu0 0
  %1103 = vmatpush2.bf16.msra.mxu0 %v1063
  %1104 = vmatprep.subr.bf16.mxu0 0
  %1105 = vmatpush2.bf16.msra.mxu0 %v1062
  %1106 = vmatprep.subr.bf16.mxu0 0
  %1107 = vmatpush2.bf16.msra.mxu0 %v1061
  %1108 = vmatprep.subr.bf16.mxu0 0
  %1109 = vmatpush2.bf16.msra.mxu0 %v1060
  %1110 = vmatprep.subr.bf16.mxu0 0
  %1111 = vmatpush2.bf16.msra.mxu0 %v1059
  %1112 = vmatprep.subr.bf16.mxu0 0
  %1113 = vmatpush2.bf16.msra.mxu0 %v1058
  %1114 = vmatprep.mubr.bf16.mxu0 %v884
  %1115 = vmatmul.mubr.bf16.gmra.mxu0 %v883
  %v1116 = vpop.f32.mrf.mxu0
  %v1117 = vadd.f32 %v984, %v1116
  %v1118 = vpop.f32.mrf.mxu0
  %v1119 = vpop.f32.mrf.mxu0
  %v1120 = vadd.f32 %v984, %v1119
  %v1121 = vpop.f32.mrf.mxu0
  %1122 = vmatprep.mubr.bf16.mxu0 %v886
  %1123 = vmatmul.mubr.bf16.gmra.mxu0 %v885
  %v1124 = vpop.f32.mrf.mxu0
  %v1125 = vadd.f32 %v984, %v1124
  %v1126 = vpop.f32.mrf.mxu0
  %v1127 = vpop.f32.mrf.mxu0
  %v1128 = vadd.f32 %v984, %v1127
  %v1129 = vpop.f32.mrf.mxu0
  %1130 = vmatprep.mubr.bf16.mxu0 %v888
  %1131 = vmatmul.mubr.bf16.gmra.mxu0 %v887
  %v1132 = vpop.f32.mrf.mxu0
  %v1133 = vadd.f32 %v984, %v1132
  %v1134 = vpop.f32.mrf.mxu0
  %v1135 = vpop.f32.mrf.mxu0
  %v1136 = vadd.f32 %v984, %v1135
  %v1137 = vpop.f32.mrf.mxu0
  %1138 = vmatprep.mubr.bf16.mxu0 %v890
  %1139 = vmatmul.mubr.bf16.gmra.mxu0 %v889
  %v1140 = vpop.f32.mrf.mxu0
  %v1141 = vadd.f32 %v984, %v1140
  %v1142 = vpop.f32.mrf.mxu0
  %v1143 = vpop.f32.mrf.mxu0
  %v1144 = vadd.f32 %v984, %v1143
  %v1145 = vpop.f32.mrf.mxu0
  %1146 = vmatprep.mubr.bf16.mxu0 %v892
  %1147 = vmatmul.mubr.bf16.gmra.mxu0 %v891
  %v1148 = vpop.f32.mrf.mxu0
  %v1149 = vadd.f32 %v984, %v1148
  %v1150 = vpop.f32.mrf.mxu0
  %v1151 = vpop.f32.mrf.mxu0
  %v1152 = vadd.f32 %v984, %v1151
  %v1153 = vpop.f32.mrf.mxu0
  %1154 = vmatprep.mubr.bf16.mxu0 %v894
  %1155 = vmatmul.mubr.bf16.gmra.mxu0 %v893
  %v1156 = vpop.f32.mrf.mxu0
  %v1157 = vadd.f32 %v984, %v1156
  %v1158 = vpop.f32.mrf.mxu0
  %v1159 = vpop.f32.mrf.mxu0
  %v1160 = vadd.f32 %v984, %v1159
  %v1161 = vpop.f32.mrf.mxu0
  %1162 = vmatprep.mubr.bf16.mxu0 %v896
  %1163 = vmatmul.mubr.bf16.gmra.mxu0 %v895
  %v1164 = vpop.f32.mrf.mxu0
  %v1165 = vadd.f32 %v984, %v1164
  %v1166 = vpop.f32.mrf.mxu0
  %v1167 = vpop.f32.mrf.mxu0
  %v1168 = vadd.f32 %v984, %v1167
  %v1169 = vpop.f32.mrf.mxu0
  %1170 = vmatprep.mubr.bf16.mxu0 %v898
  %1171 = vmatmul.mubr.bf16.gmra.mxu0 %v897
  %v1172 = vpop.f32.mrf.mxu0
  %v1173 = vadd.f32 %v984, %v1172
  %v1174 = vpop.f32.mrf.mxu0
  %v1175 = vpop.f32.mrf.mxu0
  %v1176 = vadd.f32 %v984, %v1175
  %v1177 = vpop.f32.mrf.mxu0
  %1178 = vmatprep.mubr.bf16.mxu0 %v900
  %1179 = vmatmul.mubr.bf16.gmra.mxu0 %v899
  %v1180 = vpop.f32.mrf.mxu0
  %v1181 = vadd.f32 %v984, %v1180
  %v1182 = vpop.f32.mrf.mxu0
  %v1183 = vpop.f32.mrf.mxu0
  %v1184 = vadd.f32 %v984, %v1183
  %v1185 = vpop.f32.mrf.mxu0
  %1186 = vmatprep.mubr.bf16.mxu0 %v902
  %1187 = vmatmul.mubr.bf16.gmra.mxu0 %v901
  %v1188 = vpop.f32.mrf.mxu0
  %v1189 = vadd.f32 %v984, %v1188
  %v1190 = vpop.f32.mrf.mxu0
  %v1191 = vpop.f32.mrf.mxu0
  %v1192 = vadd.f32 %v984, %v1191
  %v1193 = vpop.f32.mrf.mxu0
  %1194 = vmatprep.mubr.bf16.mxu0 %v904
  %1195 = vmatmul.mubr.bf16.gmra.mxu0 %v903
  %v1196 = vpop.f32.mrf.mxu0
  %v1197 = vadd.f32 %v984, %v1196
  %v1198 = vpop.f32.mrf.mxu0
  %v1199 = vpop.f32.mrf.mxu0
  %v1200 = vadd.f32 %v984, %v1199
  %v1201 = vpop.f32.mrf.mxu0
  %1202 = vmatprep.mubr.bf16.mxu0 %v906
  %1203 = vmatmul.mubr.bf16.gmra.mxu0 %v905
  %v1204 = vpop.f32.mrf.mxu0
  %v1205 = vadd.f32 %v984, %v1204
  %v1206 = vpop.f32.mrf.mxu0
  %v1207 = vpop.f32.mrf.mxu0
  %v1208 = vadd.f32 %v984, %v1207
  %v1209 = vpop.f32.mrf.mxu0
  %1210 = vmatprep.mubr.bf16.mxu0 %v908
  %1211 = vmatmul.mubr.bf16.gmra.mxu0 %v907
  %v1212 = vpop.f32.mrf.mxu0
  %v1213 = vadd.f32 %v984, %v1212
  %v1214 = vpop.f32.mrf.mxu0
  %v1215 = vpop.f32.mrf.mxu0
  %v1216 = vadd.f32 %v984, %v1215
  %v1217 = vpop.f32.mrf.mxu0
  %1218 = vmatprep.mubr.bf16.mxu0 %v910
  %1219 = vmatmul.mubr.bf16.gmra.mxu0 %v909
  %v1220 = vpop.f32.mrf.mxu0
  %v1221 = vadd.f32 %v984, %v1220
  %v1222 = vpop.f32.mrf.mxu0
  %v1223 = vpop.f32.mrf.mxu0
  %v1224 = vadd.f32 %v984, %v1223
  %v1225 = vpop.f32.mrf.mxu0
  %1226 = vmatprep.mubr.bf16.mxu0 %v912
  %1227 = vmatmul.mubr.bf16.gmra.mxu0 %v911
  %v1228 = vpop.f32.mrf.mxu0
  %v1229 = vadd.f32 %v984, %v1228
  %v1230 = vpop.f32.mrf.mxu0
  %v1231 = vpop.f32.mrf.mxu0
  %v1232 = vadd.f32 %v984, %v1231
  %v1233 = vpop.f32.mrf.mxu0
  %1234 = vmatprep.mubr.bf16.mxu0 %v914
  %1235 = vmatmul.mubr.bf16.gmra.mxu0 %v913
  %v1236 = vpop.f32.mrf.mxu0
  %v1237 = vadd.f32 %v984, %v1236
  %v1238 = vpop.f32.mrf.mxu0
  %v1239 = vpop.f32.mrf.mxu0
  %v1240 = vadd.f32 %v984, %v1239
  %v1241 = vpop.f32.mrf.mxu0
  %1242 = vmatprep.mubr.bf16.mxu0 %v916
  %1243 = vmatmul.mubr.bf16.gmra.mxu0 %v915
  %v1244 = vpop.f32.mrf.mxu0
  %v1245 = vadd.f32 %v984, %v1244
  %v1246 = vpop.f32.mrf.mxu0
  %v1247 = vpop.f32.mrf.mxu0
  %v1248 = vadd.f32 %v984, %v1247
  %v1249 = vpop.f32.mrf.mxu0
  %1250 = vmatprep.mubr.bf16.mxu0 %v918
  %1251 = vmatmul.mubr.bf16.gmra.mxu0 %v917
  %v1252 = vpop.f32.mrf.mxu0
  %v1253 = vadd.f32 %v984, %v1252
  %v1254 = vpop.f32.mrf.mxu0
  %v1255 = vpop.f32.mrf.mxu0
  %v1256 = vadd.f32 %v984, %v1255
  %v1257 = vpop.f32.mrf.mxu0
  %1258 = vmatprep.mubr.bf16.mxu0 %v920
  %1259 = vmatmul.mubr.bf16.gmra.mxu0 %v919
  %v1260 = vpop.f32.mrf.mxu0
  %v1261 = vadd.f32 %v984, %v1260
  %v1262 = vpop.f32.mrf.mxu0
  %v1263 = vpop.f32.mrf.mxu0
  %v1264 = vadd.f32 %v984, %v1263
  %v1265 = vpop.f32.mrf.mxu0
  %1266 = vmatprep.mubr.bf16.mxu0 %v922
  %1267 = vmatmul.mubr.bf16.gmra.mxu0 %v921
  %v1268 = vpop.f32.mrf.mxu0
  %v1269 = vadd.f32 %v984, %v1268
  %v1270 = vpop.f32.mrf.mxu0
  %v1271 = vpop.f32.mrf.mxu0
  %v1272 = vadd.f32 %v984, %v1271
  %v1273 = vpop.f32.mrf.mxu0
  %1274 = vmatprep.mubr.bf16.mxu0 %v924
  %1275 = vmatmul.mubr.bf16.gmra.mxu0 %v923
  %v1276 = vpop.f32.mrf.mxu0
  %v1277 = vadd.f32 %v984, %v1276
  %v1278 = vpop.f32.mrf.mxu0
  %v1279 = vpop.f32.mrf.mxu0
  %v1280 = vadd.f32 %v984, %v1279
  %v1281 = vpop.f32.mrf.mxu0
  %1282 = vmatprep.mubr.bf16.mxu0 %v926
  %1283 = vmatmul.mubr.bf16.gmra.mxu0 %v925
  %v1284 = vpop.f32.mrf.mxu0
  %v1285 = vadd.f32 %v984, %v1284
  %v1286 = vpop.f32.mrf.mxu0
  %v1287 = vpop.f32.mrf.mxu0
  %v1288 = vadd.f32 %v984, %v1287
  %v1289 = vpop.f32.mrf.mxu0
  %1290 = vmatprep.mubr.bf16.mxu0 %v928
  %1291 = vmatmul.mubr.bf16.gmra.mxu0 %v927
  %v1292 = vpop.f32.mrf.mxu0
  %v1293 = vadd.f32 %v984, %v1292
  %v1294 = vpop.f32.mrf.mxu0
  %v1295 = vpop.f32.mrf.mxu0
  %v1296 = vadd.f32 %v984, %v1295
  %v1297 = vpop.f32.mrf.mxu0
  %1298 = vmatprep.mubr.bf16.mxu0 %v930
  %1299 = vmatmul.mubr.bf16.gmra.mxu0 %v929
  %v1300 = vpop.f32.mrf.mxu0
  %v1301 = vadd.f32 %v984, %v1300
  %v1302 = vpop.f32.mrf.mxu0
  %v1303 = vpop.f32.mrf.mxu0
  %v1304 = vadd.f32 %v984, %v1303
  %v1305 = vpop.f32.mrf.mxu0
  %1306 = vmatprep.mubr.bf16.mxu0 %v932
  %1307 = vmatmul.mubr.bf16.gmra.mxu0 %v931
  %v1308 = vpop.f32.mrf.mxu0
  %v1309 = vadd.f32 %v984, %v1308
  %v1310 = vpop.f32.mrf.mxu0
  %v1311 = vpop.f32.mrf.mxu0
  %v1312 = vadd.f32 %v984, %v1311
  %v1313 = vpop.f32.mrf.mxu0
  %1314 = vmatprep.mubr.bf16.mxu0 %v934
  %1315 = vmatmul.mubr.bf16.gmra.mxu0 %v933
  %v1316 = vpop.f32.mrf.mxu0
  %v1317 = vadd.f32 %v984, %v1316
  %v1318 = vpop.f32.mrf.mxu0
  %v1319 = vpop.f32.mrf.mxu0
  %v1320 = vadd.f32 %v984, %v1319
  %v1321 = vpop.f32.mrf.mxu0
  %1322 = vmatprep.mubr.bf16.mxu0 %v936
  %1323 = vmatmul.mubr.bf16.gmra.mxu0 %v935
  %v1324 = vpop.f32.mrf.mxu0
  %v1325 = vadd.f32 %v984, %v1324
  %v1326 = vpop.f32.mrf.mxu0
  %v1327 = vpop.f32.mrf.mxu0
  %v1328 = vadd.f32 %v984, %v1327
  %v1329 = vpop.f32.mrf.mxu0
  %1330 = vmatprep.mubr.bf16.mxu0 %v938
  %1331 = vmatmul.mubr.bf16.gmra.mxu0 %v937
  %v1332 = vpop.f32.mrf.mxu0
  %v1333 = vadd.f32 %v984, %v1332
  %v1334 = vpop.f32.mrf.mxu0
  %v1335 = vpop.f32.mrf.mxu0
  %v1336 = vadd.f32 %v984, %v1335
  %v1337 = vpop.f32.mrf.mxu0
  %1338 = vmatprep.mubr.bf16.mxu0 %v940
  %1339 = vmatmul.mubr.bf16.gmra.mxu0 %v939
  %v1340 = vpop.f32.mrf.mxu0
  %v1341 = vadd.f32 %v984, %v1340
  %v1342 = vpop.f32.mrf.mxu0
  %v1343 = vpop.f32.mrf.mxu0
  %v1344 = vadd.f32 %v984, %v1343
  %v1345 = vpop.f32.mrf.mxu0
  %1346 = vmatprep.mubr.bf16.mxu0 %v942
  %1347 = vmatmul.mubr.bf16.gmra.mxu0 %v941
  %v1348 = vpop.f32.mrf.mxu0
  %v1349 = vadd.f32 %v984, %v1348
  %v1350 = vpop.f32.mrf.mxu0
  %v1351 = vpop.f32.mrf.mxu0
  %v1352 = vadd.f32 %v984, %v1351
  %v1353 = vpop.f32.mrf.mxu0
  %1354 = vmatprep.mubr.bf16.mxu0 %v944
  %1355 = vmatmul.mubr.bf16.gmra.mxu0 %v943
  %v1356 = vpop.f32.mrf.mxu0
  %v1357 = vadd.f32 %v984, %v1356
  %v1358 = vpop.f32.mrf.mxu0
  %v1359 = vpop.f32.mrf.mxu0
  %v1360 = vadd.f32 %v984, %v1359
  %v1361 = vpop.f32.mrf.mxu0
  %1362 = vmatprep.mubr.bf16.mxu0 %v946
  %1363 = vmatmul.mubr.bf16.gmra.mxu0 %v945
  %v1364 = vpop.f32.mrf.mxu0
  %v1365 = vadd.f32 %v984, %v1364
  %v1366 = vpop.f32.mrf.mxu0
  %v1367 = vpop.f32.mrf.mxu0
  %v1368 = vadd.f32 %v984, %v1367
  %v1369 = vpop.f32.mrf.mxu0
  %1370 = vdwg.mxu0
  %1371 = vst [vmem:[%s5] sm:$0xff] %v1117
  %1372 = vst [vmem:[%s5 + $0x8] sm:$0xff] %v1120
  %1373 = vst [vmem:[%s5 + $0x10] sm:$0xff] %v1125
  %1374 = vst [vmem:[%s5 + $0x18] sm:$0xff] %v1128
  %1375 = vst [vmem:[%s5 + $0x20] sm:$0xff] %v1133
  %1376 = vst [vmem:[%s5 + $0x28] sm:$0xff] %v1136
  %1377 = vst [vmem:[%s5 + $0x30] sm:$0xff] %v1141
  %1378 = vst [vmem:[%s5 + $0x38] sm:$0xff] %v1144
  %1379 = vst [vmem:[%s5 + $0x40] sm:$0xff] %v1149
  %1380 = vst [vmem:[%s5 + $0x48] sm:$0xff] %v1152
  %1381 = vst [vmem:[%s5 + $0x50] sm:$0xff] %v1157
  %1382 = vst [vmem:[%s5 + $0x58] sm:$0xff] %v1160
  %1383 = vst [vmem:[%s5 + $0x60] sm:$0xff] %v1165
  %1384 = vst [vmem:[%s5 + $0x68] sm:$0xff] %v1168
  %1385 = vst [vmem:[%s5 + $0x70] sm:$0xff] %v1173
  %1386 = vst [vmem:[%s5 + $0x78] sm:$0xff] %v1176
  %1387 = vst [vmem:[%s5 + $0x80] sm:$0xff] %v1181
  %1388 = vst [vmem:[%s5 + $0x88] sm:$0xff] %v1184
  %1389 = vst [vmem:[%s5 + $0x90] sm:$0xff] %v1189
  %1390 = vst [vmem:[%s5 + $0x98] sm:$0xff] %v1192
  %1391 = vst [vmem:[%s5 + $0xa0] sm:$0xff] %v1197
  %1392 = vst [vmem:[%s5 + $0xa8] sm:$0xff] %v1200
  %1393 = vst [vmem:[%s5 + $0xb0] sm:$0xff] %v1205
  %1394 = vst [vmem:[%s5 + $0xb8] sm:$0xff] %v1208
  %1395 = vst [vmem:[%s5 + $0xc0] sm:$0xff] %v1213
  %1396 = vst [vmem:[%s5 + $0xc8] sm:$0xff] %v1216
  %1397 = vst [vmem:[%s5 + $0xd0] sm:$0xff] %v1221
  %1398 = vst [vmem:[%s5 + $0xd8] sm:$0xff] %v1224
  %1399 = vst [vmem:[%s5 + $0xe0] sm:$0xff] %v1229
  %1400 = vst [vmem:[%s5 + $0xe8] sm:$0xff] %v1232
  %1401 = vst [vmem:[%s5 + $0xf0] sm:$0xff] %v1237
  %1402 = vst [vmem:[%s5 + $0xf8] sm:$0xff] %v1240
  %1403 = vst [vmem:[%s5 + $0x100] sm:$0xff] %v1245
  %1404 = vst [vmem:[%s5 + $0x108] sm:$0xff] %v1248
  %1405 = vst [vmem:[%s5 + $0x110] sm:$0xff] %v1253
  %1406 = vst [vmem:[%s5 + $0x118] sm:$0xff] %v1256
  %1407 = vst [vmem:[%s5 + $0x120] sm:$0xff] %v1261
  %1408 = vst [vmem:[%s5 + $0x128] sm:$0xff] %v1264
  %1409 = vst [vmem:[%s5 + $0x130] sm:$0xff] %v1269
  %1410 = vst [vmem:[%s5 + $0x138] sm:$0xff] %v1272
  %1411 = vst [vmem:[%s5 + $0x140] sm:$0xff] %v1277
  %1412 = vst [vmem:[%s5 + $0x148] sm:$0xff] %v1280
  %1413 = vst [vmem:[%s5 + $0x150] sm:$0xff] %v1285
  %1414 = vst [vmem:[%s5 + $0x158] sm:$0xff] %v1288
  %1415 = vst [vmem:[%s5 + $0x160] sm:$0xff] %v1293
  %1416 = vst [vmem:[%s5 + $0x168] sm:$0xff] %v1296
  %1417 = vst [vmem:[%s5 + $0x170] sm:$0xff] %v1301
  %1418 = vst [vmem:[%s5 + $0x178] sm:$0xff] %v1304
  %1419 = vst [vmem:[%s5 + $0x180] sm:$0xff] %v1309
  %1420 = vst [vmem:[%s5 + $0x188] sm:$0xff] %v1312
  %1421 = vst [vmem:[%s5 + $0x190] sm:$0xff] %v1317
  %1422 = vst [vmem:[%s5 + $0x198] sm:$0xff] %v1320
  %1423 = vst [vmem:[%s5 + $0x1a0] sm:$0xff] %v1325
  %1424 = vst [vmem:[%s5 + $0x1a8] sm:$0xff] %v1328
  %1425 = vst [vmem:[%s5 + $0x1b0] sm:$0xff] %v1333
  %1426 = vst [vmem:[%s5 + $0x1b8] sm:$0xff] %v1336
  %1427 = vst [vmem:[%s5 + $0x1c0] sm:$0xff] %v1341
  %1428 = vst [vmem:[%s5 + $0x1c8] sm:$0xff] %v1344
  %1429 = vst [vmem:[%s5 + $0x1d0] sm:$0xff] %v1349
  %1430 = vst [vmem:[%s5 + $0x1d8] sm:$0xff] %v1352
  %1431 = vst [vmem:[%s5 + $0x1e0] sm:$0xff] %v1357
  %1432 = vst [vmem:[%s5 + $0x1e8] sm:$0xff] %v1360
  %1433 = vst [vmem:[%s5 + $0x1f0] sm:$0xff] %v1365
  %1434 = vst [vmem:[%s5 + $0x1f8] sm:$0xff] %v1368
  // Predicated region
  $region22: #{forward.3} parent=0 // pred_check
    _
  $region23: #{forward.3} parent=0 // pred_check_branch
    %1436 = sbr.rel (0) target = $region25
  $region24: #{forward.3} parent=0 // pred_region
    _
  $region25: #{forward.3} parent=0 // pred_fallthru
    _
  // Predicated region
  $region26: #{forward.3} parent=0 // pred_check
    _
  $region27: #{forward.3} parent=0 // pred_check_branch
    %1438 = sbr.rel (0) target = $region29
  $region28: #{forward.3} parent=0 // pred_region
    _
  $region29: #{forward.3} parent=0 // pred_fallthru
    _

// kernel: forward.2
$region0: #{forward.2}
  #allocation0 [shape = 'u32[]', space=smem, size = 0x4, offset = 0x4, fixed_abs, tag = 'smem constant byte address 0x4 - core index']
  #allocation1 [shape = 'u32[144,128]{1,0:T(1,128)}', space=vmem, size = 0x12000, scoped, tag = 'internal scratch']
  %s0 = inlined_call_operand.vmem [shape: f32[1024,16], index: 0, kind: input, shape index: {}]
  %s1 = inlined_call_operand.vmem [shape: f32[16,64], index: 1, kind: input, shape index: {}]
  %s2 = inlined_call_operand.vmem [shape: f32[1,64], index: 2, kind: input, shape index: {}]
  %s3 = inlined_call_operand.vmem [shape: f32[64,64], index: 3, kind: output, shape index: {}]
  %s4 = sld [smem:[#allocation0]]
  $region22: #{forward.2} parent=0
    _
  %s6 = ssub.s32 1, %s4
  %s7 = scalar_select 0, %s6, %s4
  // Predicated region
  $region2: #{forward.2} parent=0 // pred_check
    _
  $region3: #{forward.2} parent=0 // pred_check_branch
    %9 = sbr.rel (0) target = $region5
  $region4: #{forward.2} parent=0 // pred_region
    _
  $region5: #{forward.2} parent=0 // pred_fallthru
    _
  // Predicated region
  $region6: #{forward.2} parent=0 // pred_check
    _
  $region7: #{forward.2} parent=0 // pred_check_branch
    %11 = sbr.rel (0) target = $region9
  $region8: #{forward.2} parent=0 // pred_region
    _
  $region9: #{forward.2} parent=0 // pred_fallthru
    _
  // Predicated region
  $region10: #{forward.2} parent=0 // pred_check
    _
  $region11: #{forward.2} parent=0 // pred_check_branch
    %13 = sbr.rel (0) target = $region13
  $region12: #{forward.2} parent=0 // pred_region
    _
  $region13: #{forward.2} parent=0 // pred_fallthru
    _
  %v14 = vld [vmem:[%s0] sm:$0xff]
  %v15 = vld [vmem:[%s0 + $0x8] sm:$0xff]
  %v16 = vld [vmem:[%s0 + $0x10] sm:$0xff]
  %v17 = vld [vmem:[%s0 + $0x18] sm:$0xff]
  %v18 = vld [vmem:[%s0 + $0x20] sm:$0xff]
  %v19 = vld [vmem:[%s0 + $0x28] sm:$0xff]
  %v20 = vld [vmem:[%s0 + $0x30] sm:$0xff]
  %v21 = vld [vmem:[%s0 + $0x38] sm:$0xff]
  %v22 = vld [vmem:[%s0 + $0x40] sm:$0xff]
  %v23 = vld [vmem:[%s0 + $0x48] sm:$0xff]
  %v24 = vld [vmem:[%s0 + $0x50] sm:$0xff]
  %v25 = vld [vmem:[%s0 + $0x58] sm:$0xff]
  %v26 = vld [vmem:[%s0 + $0x60] sm:$0xff]
  %v27 = vld [vmem:[%s0 + $0x68] sm:$0xff]
  %v28 = vld [vmem:[%s0 + $0x70] sm:$0xff]
  %v29 = vld [vmem:[%s0 + $0x78] sm:$0xff]
  %v30 = vld [vmem:[%s0 + $0x80] sm:$0xff]
  %v31 = vld [vmem:[%s0 + $0x88] sm:$0xff]
  %v32 = vld [vmem:[%s0 + $0x90] sm:$0xff]
  %v33 = vld [vmem:[%s0 + $0x98] sm:$0xff]
  %v34 = vld [vmem:[%s0 + $0xa0] sm:$0xff]
  %v35 = vld [vmem:[%s0 + $0xa8] sm:$0xff]
  %v36 = vld [vmem:[%s0 + $0xb0] sm:$0xff]
  %v37 = vld [vmem:[%s0 + $0xb8] sm:$0xff]
  %v38 = vld [vmem:[%s0 + $0xc0] sm:$0xff]
  %v39 = vld [vmem:[%s0 + $0xc8] sm:$0xff]
  %v40 = vld [vmem:[%s0 + $0xd0] sm:$0xff]
  %v41 = vld [vmem:[%s0 + $0xd8] sm:$0xff]
  %v42 = vld [vmem:[%s0 + $0xe0] sm:$0xff]
  %v43 = vld [vmem:[%s0 + $0xe8] sm:$0xff]
  %v44 = vld [vmem:[%s0 + $0xf0] sm:$0xff]
  %v45 = vld [vmem:[%s0 + $0xf8] sm:$0xff]
  %v46 = vld [vmem:[%s0 + $0x100] sm:$0xff]
  %v47 = vld [vmem:[%s0 + $0x108] sm:$0xff]
  %v48 = vld [vmem:[%s0 + $0x110] sm:$0xff]
  %v49 = vld [vmem:[%s0 + $0x118] sm:$0xff]
  %v50 = vld [vmem:[%s0 + $0x120] sm:$0xff]
  %v51 = vld [vmem:[%s0 + $0x128] sm:$0xff]
  %v52 = vld [vmem:[%s0 + $0x130] sm:$0xff]
  %v53 = vld [vmem:[%s0 + $0x138] sm:$0xff]
  %v54 = vld [vmem:[%s0 + $0x140] sm:$0xff]
  %v55 = vld [vmem:[%s0 + $0x148] sm:$0xff]
  %v56 = vld [vmem:[%s0 + $0x150] sm:$0xff]
  %v57 = vld [vmem:[%s0 + $0x158] sm:$0xff]
  %v58 = vld [vmem:[%s0 + $0x160] sm:$0xff]
  %v59 = vld [vmem:[%s0 + $0x168] sm:$0xff]
  %v60 = vld [vmem:[%s0 + $0x170] sm:$0xff]
  %v61 = vld [vmem:[%s0 + $0x178] sm:$0xff]
  %v62 = vld [vmem:[%s0 + $0x180] sm:$0xff]
  %v63 = vld [vmem:[%s0 + $0x188] sm:$0xff]
  %v64 = vld [vmem:[%s0 + $0x190] sm:$0xff]
  %v65 = vld [vmem:[%s0 + $0x198] sm:$0xff]
  %v66 = vld [vmem:[%s0 + $0x1a0] sm:$0xff]
  %v67 = vld [vmem:[%s0 + $0x1a8] sm:$0xff]
  %v68 = vld [vmem:[%s0 + $0x1b0] sm:$0xff]
  %v69 = vld [vmem:[%s0 + $0x1b8] sm:$0xff]
  %v70 = vld [vmem:[%s0 + $0x1c0] sm:$0xff]
  %v71 = vld [vmem:[%s0 + $0x1c8] sm:$0xff]
  %v72 = vld [vmem:[%s0 + $0x1d0] sm:$0xff]
  %v73 = vld [vmem:[%s0 + $0x1d8] sm:$0xff]
  %v74 = vld [vmem:[%s0 + $0x1e0] sm:$0xff]
  %v75 = vld [vmem:[%s0 + $0x1e8] sm:$0xff]
  %v76 = vld [vmem:[%s0 + $0x1f0] sm:$0xff]
  %v77 = vld [vmem:[%s0 + $0x1f8] sm:$0xff]
  %v78 = vld [vmem:[%s0 + $0x200] sm:$0xff]
  %v79 = vld [vmem:[%s0 + $0x208] sm:$0xff]
  %v80 = vld [vmem:[%s0 + $0x210] sm:$0xff]
  %v81 = vld [vmem:[%s0 + $0x218] sm:$0xff]
  %v82 = vld [vmem:[%s0 + $0x220] sm:$0xff]
  %v83 = vld [vmem:[%s0 + $0x228] sm:$0xff]
  %v84 = vld [vmem:[%s0 + $0x230] sm:$0xff]
  %v85 = vld [vmem:[%s0 + $0x238] sm:$0xff]
  %v86 = vld [vmem:[%s0 + $0x240] sm:$0xff]
  %v87 = vld [vmem:[%s0 + $0x248] sm:$0xff]
  %v88 = vld [vmem:[%s0 + $0x250] sm:$0xff]
  %v89 = vld [vmem:[%s0 + $0x258] sm:$0xff]
  %v90 = vld [vmem:[%s0 + $0x260] sm:$0xff]
  %v91 = vld [vmem:[%s0 + $0x268] sm:$0xff]
  %v92 = vld [vmem:[%s0 + $0x270] sm:$0xff]
  %v93 = vld [vmem:[%s0 + $0x278] sm:$0xff]
  %v94 = vld [vmem:[%s0 + $0x280] sm:$0xff]
  %v95 = vld [vmem:[%s0 + $0x288] sm:$0xff]
  %v96 = vld [vmem:[%s0 + $0x290] sm:$0xff]
  %v97 = vld [vmem:[%s0 + $0x298] sm:$0xff]
  %v98 = vld [vmem:[%s0 + $0x2a0] sm:$0xff]
  %v99 = vld [vmem:[%s0 + $0x2a8] sm:$0xff]
  %v100 = vld [vmem:[%s0 + $0x2b0] sm:$0xff]
  %v101 = vld [vmem:[%s0 + $0x2b8] sm:$0xff]
  %v102 = vld [vmem:[%s0 + $0x2c0] sm:$0xff]
  %v103 = vld [vmem:[%s0 + $0x2c8] sm:$0xff]
  %v104 = vld [vmem:[%s0 + $0x2d0] sm:$0xff]
  %v105 = vld [vmem:[%s0 + $0x2d8] sm:$0xff]
  %v106 = vld [vmem:[%s0 + $0x2e0] sm:$0xff]
  %v107 = vld [vmem:[%s0 + $0x2e8] sm:$0xff]
  %v108 = vld [vmem:[%s0 + $0x2f0] sm:$0xff]
  %v109 = vld [vmem:[%s0 + $0x2f8] sm:$0xff]
  %v110 = vld [vmem:[%s0 + $0x300] sm:$0xff]
  %v111 = vld [vmem:[%s0 + $0x308] sm:$0xff]
  %v112 = vld [vmem:[%s0 + $0x310] sm:$0xff]
  %v113 = vld [vmem:[%s0 + $0x318] sm:$0xff]
  %v114 = vld [vmem:[%s0 + $0x320] sm:$0xff]
  %v115 = vld [vmem:[%s0 + $0x328] sm:$0xff]
  %v116 = vld [vmem:[%s0 + $0x330] sm:$0xff]
  %v117 = vld [vmem:[%s0 + $0x338] sm:$0xff]
  %v118 = vld [vmem:[%s0 + $0x340] sm:$0xff]
  %v119 = vld [vmem:[%s0 + $0x348] sm:$0xff]
  %v120 = vld [vmem:[%s0 + $0x350] sm:$0xff]
  %v121 = vld [vmem:[%s0 + $0x358] sm:$0xff]
  %v122 = vld [vmem:[%s0 + $0x360] sm:$0xff]
  %v123 = vld [vmem:[%s0 + $0x368] sm:$0xff]
  %v124 = vld [vmem:[%s0 + $0x370] sm:$0xff]
  %v125 = vld [vmem:[%s0 + $0x378] sm:$0xff]
  %v126 = vld [vmem:[%s0 + $0x380] sm:$0xff]
  %v127 = vld [vmem:[%s0 + $0x388] sm:$0xff]
  %v128 = vld [vmem:[%s0 + $0x390] sm:$0xff]
  %v129 = vld [vmem:[%s0 + $0x398] sm:$0xff]
  %v130 = vld [vmem:[%s0 + $0x3a0] sm:$0xff]
  %v131 = vld [vmem:[%s0 + $0x3a8] sm:$0xff]
  %v132 = vld [vmem:[%s0 + $0x3b0] sm:$0xff]
  %v133 = vld [vmem:[%s0 + $0x3b8] sm:$0xff]
  %v134 = vld [vmem:[%s0 + $0x3c0] sm:$0xff]
  %v135 = vld [vmem:[%s0 + $0x3c8] sm:$0xff]
  %v136 = vld [vmem:[%s0 + $0x3d0] sm:$0xff]
  %v137 = vld [vmem:[%s0 + $0x3d8] sm:$0xff]
  %v138 = vld [vmem:[%s0 + $0x3e0] sm:$0xff]
  %v139 = vld [vmem:[%s0 + $0x3e8] sm:$0xff]
  %v140 = vld [vmem:[%s0 + $0x3f0] sm:$0xff]
  %v141 = vld [vmem:[%s0 + $0x3f8] sm:$0xff]
  %v142 = vld [vmem:[%s1] sm:$0xff]
  %v143 = vld [vmem:[%s1 + $0x8] sm:$0xff]
  %v144 = vld [vmem:[%s2] sm:$0x1]
  %v146 = vlaneseq
  %v147 = vshrl.u32 %v146, 7
  %v148 = vsub.s32 0, %v147
  %v149 = vrot.slane %v144, %v148
  %vm151 = vcmask 130048
  %v153 = vsel %vm151, %v14, 0
  %v156 = vsel %vm151, %v15, 0
  %v159 = vsel %vm151, %v16, 0
  %v162 = vsel %vm151, %v17, 0
  %v165 = vsel %vm151, %v18, 0
  %v168 = vsel %vm151, %v19, 0
  %v171 = vsel %vm151, %v20, 0
  %v174 = vsel %vm151, %v21, 0
  %v177 = vsel %vm151, %v22, 0
  %v180 = vsel %vm151, %v23, 0
  %v183 = vsel %vm151, %v24, 0
  %v186 = vsel %vm151, %v25, 0
  %v189 = vsel %vm151, %v26, 0
  %v192 = vsel %vm151, %v27, 0
  %v195 = vsel %vm151, %v28, 0
  %v198 = vsel %vm151, %v29, 0
  %v201 = vsel %vm151, %v30, 0
  %v204 = vsel %vm151, %v31, 0
  %v207 = vsel %vm151, %v32, 0
  %v210 = vsel %vm151, %v33, 0
  %v213 = vsel %vm151, %v34, 0
  %v216 = vsel %vm151, %v35, 0
  %v219 = vsel %vm151, %v36, 0
  %v222 = vsel %vm151, %v37, 0
  %v225 = vsel %vm151, %v38, 0
  %v228 = vsel %vm151, %v39, 0
  %v231 = vsel %vm151, %v40, 0
  %v234 = vsel %vm151, %v41, 0
  %v237 = vsel %vm151, %v42, 0
  %v240 = vsel %vm151, %v43, 0
  %v243 = vsel %vm151, %v44, 0
  %v246 = vsel %vm151, %v45, 0
  %v249 = vsel %vm151, %v46, 0
  %v252 = vsel %vm151, %v47, 0
  %v255 = vsel %vm151, %v48, 0
  %v258 = vsel %vm151, %v49, 0
  %v261 = vsel %vm151, %v50, 0
  %v264 = vsel %vm151, %v51, 0
  %v267 = vsel %vm151, %v52, 0
  %v270 = vsel %vm151, %v53, 0
  %v273 = vsel %vm151, %v54, 0
  %v276 = vsel %vm151, %v55, 0
  %v279 = vsel %vm151, %v56, 0
  %v282 = vsel %vm151, %v57, 0
  %v285 = vsel %vm151, %v58, 0
  %v288 = vsel %vm151, %v59, 0
  %v291 = vsel %vm151, %v60, 0
  %v294 = vsel %vm151, %v61, 0
  %v297 = vsel %vm151, %v62, 0
  %v300 = vsel %vm151, %v63, 0
  %v303 = vsel %vm151, %v64, 0
  %v306 = vsel %vm151, %v65, 0
  %v309 = vsel %vm151, %v66, 0
  %v312 = vsel %vm151, %v67, 0
  %v315 = vsel %vm151, %v68, 0
  %v318 = vsel %vm151, %v69, 0
  %v321 = vsel %vm151, %v70, 0
  %v324 = vsel %vm151, %v71, 0
  %v327 = vsel %vm151, %v72, 0
  %v330 = vsel %vm151, %v73, 0
  %v333 = vsel %vm151, %v74, 0
  %v336 = vsel %vm151, %v75, 0
  %v339 = vsel %vm151, %v76, 0
  %v342 = vsel %vm151, %v77, 0
  %v345 = vsel %vm151, %v78, 0
  %v348 = vsel %vm151, %v79, 0
  %v351 = vsel %vm151, %v80, 0
  %v354 = vsel %vm151, %v81, 0
  %v357 = vsel %vm151, %v82, 0
  %v360 = vsel %vm151, %v83, 0
  %v363 = vsel %vm151, %v84, 0
  %v366 = vsel %vm151, %v85, 0
  %v369 = vsel %vm151, %v86, 0
  %v372 = vsel %vm151, %v87, 0
  %v375 = vsel %vm151, %v88, 0
  %v378 = vsel %vm151, %v89, 0
  %v381 = vsel %vm151, %v90, 0
  %v384 = vsel %vm151, %v91, 0
  %v387 = vsel %vm151, %v92, 0
  %v390 = vsel %vm151, %v93, 0
  %v393 = vsel %vm151, %v94, 0
  %v396 = vsel %vm151, %v95, 0
  %v399 = vsel %vm151, %v96, 0
  %v402 = vsel %vm151, %v97, 0
  %v405 = vsel %vm151, %v98, 0
  %v408 = vsel %vm151, %v99, 0
  %v411 = vsel %vm151, %v100, 0
  %v414 = vsel %vm151, %v101, 0
  %v417 = vsel %vm151, %v102, 0
  %v420 = vsel %vm151, %v103, 0
  %v423 = vsel %vm151, %v104, 0
  %v426 = vsel %vm151, %v105, 0
  %v429 = vsel %vm151, %v106, 0
  %v432 = vsel %vm151, %v107, 0
  %v435 = vsel %vm151, %v108, 0
  %v438 = vsel %vm151, %v109, 0
  %v441 = vsel %vm151, %v110, 0
  %v444 = vsel %vm151, %v111, 0
  %v447 = vsel %vm151, %v112, 0
  %v450 = vsel %vm151, %v113, 0
  %v453 = vsel %vm151, %v114, 0
  %v456 = vsel %vm151, %v115, 0
  %v459 = vsel %vm151, %v116, 0
  %v462 = vsel %vm151, %v117, 0
  %v465 = vsel %vm151, %v118, 0
  %v468 = vsel %vm151, %v119, 0
  %v471 = vsel %vm151, %v120, 0
  %v474 = vsel %vm151, %v121, 0
  %v477 = vsel %vm151, %v122, 0
  %v480 = vsel %vm151, %v123, 0
  %v483 = vsel %vm151, %v124, 0
  %v486 = vsel %vm151, %v125, 0
  %v489 = vsel %vm151, %v126, 0
  %v492 = vsel %vm151, %v127, 0
  %v495 = vsel %vm151, %v128, 0
  %v498 = vsel %vm151, %v129, 0
  %v501 = vsel %vm151, %v130, 0
  %v504 = vsel %vm151, %v131, 0
  %v507 = vsel %vm151, %v132, 0
  %v510 = vsel %vm151, %v133, 0
  %v513 = vsel %vm151, %v134, 0
  %v516 = vsel %vm151, %v135, 0
  %v519 = vsel %vm151, %v136, 0
  %v522 = vsel %vm151, %v137, 0
  %v525 = vsel %vm151, %v138, 0
  %v528 = vsel %vm151, %v139, 0
  %v531 = vsel %vm151, %v140, 0
  %v534 = vsel %vm151, %v141, 0
  %536 = vmatprep.subr.mxu0 0.0
  %537 = vmatpush1.msra.mxu0 0.0
  %538 = vmatprep.subr.mxu0 0.0
  %539 = vmatpush1.msra.mxu0 0.0
  %540 = vmatprep.subr.mxu0 0.0
  %541 = vmatpush1.msra.mxu0 0.0
  %542 = vmatprep.subr.mxu0 0.0
  %543 = vmatpush1.msra.mxu0 0.0
  %544 = vmatprep.subr.mxu0 0.0
  %545 = vmatpush1.msra.mxu0 0.0
  %546 = vmatprep.subr.mxu0 0.0
  %547 = vmatpush1.msra.mxu0 0.0
  %548 = vmatprep.subr.mxu0 0.0
  %549 = vmatpush1.msra.mxu0 0.0
  %550 = vmatprep.subr.mxu0 0.0
  %551 = vmatpush1.msra.mxu0 0.0
  %552 = vmatprep.subr.mxu0 0.0
  %553 = vmatpush1.msra.mxu0 0.0
  %554 = vmatprep.subr.mxu0 0.0
  %555 = vmatpush1.msra.mxu0 0.0
  %556 = vmatprep.subr.mxu0 0.0
  %557 = vmatpush1.msra.mxu0 0.0
  %558 = vmatprep.subr.mxu0 0.0
  %559 = vmatpush1.msra.mxu0 0.0
  %560 = vmatprep.subr.mxu0 0.0
  %561 = vmatpush1.msra.mxu0 0.0
  %562 = vmatprep.subr.mxu0 0.0
  %563 = vmatpush1.msra.mxu0 0.0
  %564 = vmatprep.subr.mxu0 0.0
  %565 = vmatpush1.msra.mxu0 %v143
  %566 = vmatprep.subr.mxu0 0.0
  %567 = vmatpush1.msra.mxu0 %v142
  %568 = vmatprep.subr.mxu0 0.0
  %569 = vmatpush2.msra.mxu0 0.0
  %570 = vmatprep.subr.mxu0 0.0
  %571 = vmatpush2.msra.mxu0 0.0
  %572 = vmatprep.subr.mxu0 0.0
  %573 = vmatpush2.msra.mxu0 0.0
  %574 = vmatprep.subr.mxu0 0.0
  %575 = vmatpush2.msra.mxu0 0.0
  %576 = vmatprep.subr.mxu0 0.0
  %577 = vmatpush2.msra.mxu0 0.0
  %578 = vmatprep.subr.mxu0 0.0
  %579 = vmatpush2.msra.mxu0 0.0
  %580 = vmatprep.subr.mxu0 0.0
  %581 = vmatpush2.msra.mxu0 0.0
  %582 = vmatprep.subr.mxu0 0.0
  %583 = vmatpush2.msra.mxu0 0.0
  %584 = vmatprep.subr.mxu0 0.0
  %585 = vmatpush2.msra.mxu0 0.0
  %586 = vmatprep.subr.mxu0 0.0
  %587 = vmatpush2.msra.mxu0 0.0
  %588 = vmatprep.subr.mxu0 0.0
  %589 = vmatpush2.msra.mxu0 0.0
  %590 = vmatprep.subr.mxu0 0.0
  %591 = vmatpush2.msra.mxu0 0.0
  %592 = vmatprep.subr.mxu0 0.0
  %593 = vmatpush2.msra.mxu0 0.0
  %594 = vmatprep.subr.mxu0 0.0
  %595 = vmatpush2.msra.mxu0 0.0
  %596 = vmatprep.subr.mxu0 0.0
  %597 = vmatpush2.msra.mxu0 0.0
  %598 = vmatprep.subr.mxu0 0.0
  %599 = vmatpush2.msra.mxu0 0.0
  %600 = vmatprep.mubr.f32.mxu0 0.0
  %601 = vmatmul.mubr.f32.gmra.mxu0 %v153
  %v602 = vpop.f32.mrf.mxu0
  %v603 = vadd.f32 %v149, %v602
  %v604 = vpop.f32.mrf.mxu0
  %605 = vmatprep.mubr.f32.mxu0 0.0
  %606 = vmatmul.mubr.f32.gmra.mxu0 %v156
  %v607 = vpop.f32.mrf.mxu0
  %v608 = vadd.f32 %v149, %v607
  %v609 = vpop.f32.mrf.mxu0
  %610 = vmatprep.mubr.f32.mxu0 0.0
  %611 = vmatmul.mubr.f32.gmra.mxu0 %v159
  %v612 = vpop.f32.mrf.mxu0
  %v613 = vadd.f32 %v149, %v612
  %v614 = vpop.f32.mrf.mxu0
  %615 = vmatprep.mubr.f32.mxu0 0.0
  %616 = vmatmul.mubr.f32.gmra.mxu0 %v162
  %v617 = vpop.f32.mrf.mxu0
  %v618 = vadd.f32 %v149, %v617
  %v619 = vpop.f32.mrf.mxu0
  %620 = vmatprep.mubr.f32.mxu0 0.0
  %621 = vmatmul.mubr.f32.gmra.mxu0 %v165
  %v622 = vpop.f32.mrf.mxu0
  %v623 = vadd.f32 %v149, %v622
  %v624 = vpop.f32.mrf.mxu0
  %625 = vmatprep.mubr.f32.mxu0 0.0
  %626 = vmatmul.mubr.f32.gmra.mxu0 %v168
  %v627 = vpop.f32.mrf.mxu0
  %v628 = vadd.f32 %v149, %v627
  %v629 = vpop.f32.mrf.mxu0
  %630 = vmatprep.mubr.f32.mxu0 0.0
  %631 = vmatmul.mubr.f32.gmra.mxu0 %v171
  %v632 = vpop.f32.mrf.mxu0
  %v633 = vadd.f32 %v149, %v632
  %v634 = vpop.f32.mrf.mxu0
  %635 = vmatprep.mubr.f32.mxu0 0.0
  %636 = vmatmul.mubr.f32.gmra.mxu0 %v174
  %v637 = vpop.f32.mrf.mxu0
  %v638 = vadd.f32 %v149, %v637
  %v639 = vpop.f32.mrf.mxu0
  %640 = vmatprep.mubr.f32.mxu0 0.0
  %641 = vmatmul.mubr.f32.gmra.mxu0 %v177
  %v642 = vpop.f32.mrf.mxu0
  %v643 = vadd.f32 %v149, %v642
  %v644 = vpop.f32.mrf.mxu0
  %645 = vmatprep.mubr.f32.mxu0 0.0
  %646 = vmatmul.mubr.f32.gmra.mxu0 %v180
  %v647 = vpop.f32.mrf.mxu0
  %v648 = vadd.f32 %v149, %v647
  %v649 = vpop.f32.mrf.mxu0
  %650 = vmatprep.mubr.f32.mxu0 0.0
  %651 = vmatmul.mubr.f32.gmra.mxu0 %v183
  %v652 = vpop.f32.mrf.mxu0
  %v653 = vadd.f32 %v149, %v652
  %v654 = vpop.f32.mrf.mxu0
  %655 = vmatprep.mubr.f32.mxu0 0.0
  %656 = vmatmul.mubr.f32.gmra.mxu0 %v186
  %v657 = vpop.f32.mrf.mxu0
  %v658 = vadd.f32 %v149, %v657
  %v659 = vpop.f32.mrf.mxu0
  %660 = vmatprep.mubr.f32.mxu0 0.0
  %661 = vmatmul.mubr.f32.gmra.mxu0 %v189
  %v662 = vpop.f32.mrf.mxu0
  %v663 = vadd.f32 %v149, %v662
  %v664 = vpop.f32.mrf.mxu0
  %665 = vmatprep.mubr.f32.mxu0 0.0
  %666 = vmatmul.mubr.f32.gmra.mxu0 %v192
  %v667 = vpop.f32.mrf.mxu0
  %v668 = vadd.f32 %v149, %v667
  %v669 = vpop.f32.mrf.mxu0
  %670 = vmatprep.mubr.f32.mxu0 0.0
  %671 = vmatmul.mubr.f32.gmra.mxu0 %v195
  %v672 = vpop.f32.mrf.mxu0
  %v673 = vadd.f32 %v149, %v672
  %v674 = vpop.f32.mrf.mxu0
  %675 = vmatprep.mubr.f32.mxu0 0.0
  %676 = vmatmul.mubr.f32.gmra.mxu0 %v198
  %v677 = vpop.f32.mrf.mxu0
  %v678 = vadd.f32 %v149, %v677
  %v679 = vpop.f32.mrf.mxu0
  %680 = vmatprep.mubr.f32.mxu0 0.0
  %681 = vmatmul.mubr.f32.gmra.mxu0 %v201
  %v682 = vpop.f32.mrf.mxu0
  %v683 = vadd.f32 %v149, %v682
  %v684 = vpop.f32.mrf.mxu0
  %685 = vmatprep.mubr.f32.mxu0 0.0
  %686 = vmatmul.mubr.f32.gmra.mxu0 %v204
  %v687 = vpop.f32.mrf.mxu0
  %v688 = vadd.f32 %v149, %v687
  %v689 = vpop.f32.mrf.mxu0
  %690 = vmatprep.mubr.f32.mxu0 0.0
  %691 = vmatmul.mubr.f32.gmra.mxu0 %v207
  %v692 = vpop.f32.mrf.mxu0
  %v693 = vadd.f32 %v149, %v692
  %v694 = vpop.f32.mrf.mxu0
  %695 = vmatprep.mubr.f32.mxu0 0.0
  %696 = vmatmul.mubr.f32.gmra.mxu0 %v210
  %v697 = vpop.f32.mrf.mxu0
  %v698 = vadd.f32 %v149, %v697
  %v699 = vpop.f32.mrf.mxu0
  %700 = vmatprep.mubr.f32.mxu0 0.0
  %701 = vmatmul.mubr.f32.gmra.mxu0 %v213
  %v702 = vpop.f32.mrf.mxu0
  %v703 = vadd.f32 %v149, %v702
  %v704 = vpop.f32.mrf.mxu0
  %705 = vmatprep.mubr.f32.mxu0 0.0
  %706 = vmatmul.mubr.f32.gmra.mxu0 %v216
  %v707 = vpop.f32.mrf.mxu0
  %v708 = vadd.f32 %v149, %v707
  %v709 = vpop.f32.mrf.mxu0
  %710 = vmatprep.mubr.f32.mxu0 0.0
  %711 = vmatmul.mubr.f32.gmra.mxu0 %v219
  %v712 = vpop.f32.mrf.mxu0
  %v713 = vadd.f32 %v149, %v712
  %v714 = vpop.f32.mrf.mxu0
  %715 = vmatprep.mubr.f32.mxu0 0.0
  %716 = vmatmul.mubr.f32.gmra.mxu0 %v222
  %v717 = vpop.f32.mrf.mxu0
  %v718 = vadd.f32 %v149, %v717
  %v719 = vpop.f32.mrf.mxu0
  %720 = vmatprep.mubr.f32.mxu0 0.0
  %721 = vmatmul.mubr.f32.gmra.mxu0 %v225
  %v722 = vpop.f32.mrf.mxu0
  %v723 = vadd.f32 %v149, %v722
  %v724 = vpop.f32.mrf.mxu0
  %725 = vmatprep.mubr.f32.mxu0 0.0
  %726 = vmatmul.mubr.f32.gmra.mxu0 %v228
  %v727 = vpop.f32.mrf.mxu0
  %v728 = vadd.f32 %v149, %v727
  %v729 = vpop.f32.mrf.mxu0
  %730 = vmatprep.mubr.f32.mxu0 0.0
  %731 = vmatmul.mubr.f32.gmra.mxu0 %v231
  %v732 = vpop.f32.mrf.mxu0
  %v733 = vadd.f32 %v149, %v732
  %v734 = vpop.f32.mrf.mxu0
  %735 = vmatprep.mubr.f32.mxu0 0.0
  %736 = vmatmul.mubr.f32.gmra.mxu0 %v234
  %v737 = vpop.f32.mrf.mxu0
  %v738 = vadd.f32 %v149, %v737
  %v739 = vpop.f32.mrf.mxu0
  %740 = vmatprep.mubr.f32.mxu0 0.0
  %741 = vmatmul.mubr.f32.gmra.mxu0 %v237
  %v742 = vpop.f32.mrf.mxu0
  %v743 = vadd.f32 %v149, %v742
  %v744 = vpop.f32.mrf.mxu0
  %745 = vmatprep.mubr.f32.mxu0 0.0
  %746 = vmatmul.mubr.f32.gmra.mxu0 %v240
  %v747 = vpop.f32.mrf.mxu0
  %v748 = vadd.f32 %v149, %v747
  %v749 = vpop.f32.mrf.mxu0
  %750 = vmatprep.mubr.f32.mxu0 0.0
  %751 = vmatmul.mubr.f32.gmra.mxu0 %v243
  %v752 = vpop.f32.mrf.mxu0
  %v753 = vadd.f32 %v149, %v752
  %v754 = vpop.f32.mrf.mxu0
  %755 = vmatprep.mubr.f32.mxu0 0.0
  %756 = vmatmul.mubr.f32.gmra.mxu0 %v246
  %v757 = vpop.f32.mrf.mxu0
  %v758 = vadd.f32 %v149, %v757
  %v759 = vpop.f32.mrf.mxu0
  %760 = vmatprep.mubr.f32.mxu0 0.0
  %761 = vmatmul.mubr.f32.gmra.mxu0 %v249
  %v762 = vpop.f32.mrf.mxu0
  %v763 = vadd.f32 %v149, %v762
  %v764 = vpop.f32.mrf.mxu0
  %765 = vmatprep.mubr.f32.mxu0 0.0
  %766 = vmatmul.mubr.f32.gmra.mxu0 %v252
  %v767 = vpop.f32.mrf.mxu0
  %v768 = vadd.f32 %v149, %v767
  %v769 = vpop.f32.mrf.mxu0
  %770 = vmatprep.mubr.f32.mxu0 0.0
  %771 = vmatmul.mubr.f32.gmra.mxu0 %v255
  %v772 = vpop.f32.mrf.mxu0
  %v773 = vadd.f32 %v149, %v772
  %v774 = vpop.f32.mrf.mxu0
  %775 = vmatprep.mubr.f32.mxu0 0.0
  %776 = vmatmul.mubr.f32.gmra.mxu0 %v258
  %v777 = vpop.f32.mrf.mxu0
  %v778 = vadd.f32 %v149, %v777
  %v779 = vpop.f32.mrf.mxu0
  %780 = vmatprep.mubr.f32.mxu0 0.0
  %781 = vmatmul.mubr.f32.gmra.mxu0 %v261
  %v782 = vpop.f32.mrf.mxu0
  %v783 = vadd.f32 %v149, %v782
  %v784 = vpop.f32.mrf.mxu0
  %785 = vmatprep.mubr.f32.mxu0 0.0
  %786 = vmatmul.mubr.f32.gmra.mxu0 %v264
  %v787 = vpop.f32.mrf.mxu0
  %v788 = vadd.f32 %v149, %v787
  %v789 = vpop.f32.mrf.mxu0
  %790 = vmatprep.mubr.f32.mxu0 0.0
  %791 = vmatmul.mubr.f32.gmra.mxu0 %v267
  %v792 = vpop.f32.mrf.mxu0
  %v793 = vadd.f32 %v149, %v792
  %v794 = vpop.f32.mrf.mxu0
  %795 = vmatprep.mubr.f32.mxu0 0.0
  %796 = vmatmul.mubr.f32.gmra.mxu0 %v270
  %v797 = vpop.f32.mrf.mxu0
  %v798 = vadd.f32 %v149, %v797
  %v799 = vpop.f32.mrf.mxu0
  %800 = vmatprep.mubr.f32.mxu0 0.0
  %801 = vmatmul.mubr.f32.gmra.mxu0 %v273
  %v802 = vpop.f32.mrf.mxu0
  %v803 = vadd.f32 %v149, %v802
  %v804 = vpop.f32.mrf.mxu0
  %805 = vmatprep.mubr.f32.mxu0 0.0
  %806 = vmatmul.mubr.f32.gmra.mxu0 %v276
  %v807 = vpop.f32.mrf.mxu0
  %v808 = vadd.f32 %v149, %v807
  %v809 = vpop.f32.mrf.mxu0
  %810 = vmatprep.mubr.f32.mxu0 0.0
  %811 = vmatmul.mubr.f32.gmra.mxu0 %v279
  %v812 = vpop.f32.mrf.mxu0
  %v813 = vadd.f32 %v149, %v812
  %v814 = vpop.f32.mrf.mxu0
  %815 = vmatprep.mubr.f32.mxu0 0.0
  %816 = vmatmul.mubr.f32.gmra.mxu0 %v282
  %v817 = vpop.f32.mrf.mxu0
  %v818 = vadd.f32 %v149, %v817
  %v819 = vpop.f32.mrf.mxu0
  %820 = vmatprep.mubr.f32.mxu0 0.0
  %821 = vmatmul.mubr.f32.gmra.mxu0 %v285
  %v822 = vpop.f32.mrf.mxu0
  %v823 = vadd.f32 %v149, %v822
  %v824 = vpop.f32.mrf.mxu0
  %825 = vmatprep.mubr.f32.mxu0 0.0
  %826 = vmatmul.mubr.f32.gmra.mxu0 %v288
  %v827 = vpop.f32.mrf.mxu0
  %v828 = vadd.f32 %v149, %v827
  %v829 = vpop.f32.mrf.mxu0
  %830 = vmatprep.mubr.f32.mxu0 0.0
  %831 = vmatmul.mubr.f32.gmra.mxu0 %v291
  %v832 = vpop.f32.mrf.mxu0
  %v833 = vadd.f32 %v149, %v832
  %v834 = vpop.f32.mrf.mxu0
  %835 = vmatprep.mubr.f32.mxu0 0.0
  %836 = vmatmul.mubr.f32.gmra.mxu0 %v294
  %v837 = vpop.f32.mrf.mxu0
  %v838 = vadd.f32 %v149, %v837
  %v839 = vpop.f32.mrf.mxu0
  %840 = vmatprep.mubr.f32.mxu0 0.0
  %841 = vmatmul.mubr.f32.gmra.mxu0 %v297
  %v842 = vpop.f32.mrf.mxu0
  %v843 = vadd.f32 %v149, %v842
  %v844 = vpop.f32.mrf.mxu0
  %845 = vmatprep.mubr.f32.mxu0 0.0
  %846 = vmatmul.mubr.f32.gmra.mxu0 %v300
  %v847 = vpop.f32.mrf.mxu0
  %v848 = vadd.f32 %v149, %v847
  %v849 = vpop.f32.mrf.mxu0
  %850 = vmatprep.mubr.f32.mxu0 0.0
  %851 = vmatmul.mubr.f32.gmra.mxu0 %v303
  %v852 = vpop.f32.mrf.mxu0
  %v853 = vadd.f32 %v149, %v852
  %v854 = vpop.f32.mrf.mxu0
  %855 = vmatprep.mubr.f32.mxu0 0.0
  %856 = vmatmul.mubr.f32.gmra.mxu0 %v306
  %v857 = vpop.f32.mrf.mxu0
  %v858 = vadd.f32 %v149, %v857
  %v859 = vpop.f32.mrf.mxu0
  %860 = vmatprep.mubr.f32.mxu0 0.0
  %861 = vmatmul.mubr.f32.gmra.mxu0 %v309
  %v862 = vpop.f32.mrf.mxu0
  %v863 = vadd.f32 %v149, %v862
  %v864 = vpop.f32.mrf.mxu0
  %865 = vmatprep.mubr.f32.mxu0 0.0
  %866 = vmatmul.mubr.f32.gmra.mxu0 %v312
  %v867 = vpop.f32.mrf.mxu0
  %v868 = vadd.f32 %v149, %v867
  %v869 = vpop.f32.mrf.mxu0
  %870 = vmatprep.mubr.f32.mxu0 0.0
  %871 = vmatmul.mubr.f32.gmra.mxu0 %v315
  %v872 = vpop.f32.mrf.mxu0
  %v873 = vadd.f32 %v149, %v872
  %v874 = vpop.f32.mrf.mxu0
  %875 = vmatprep.mubr.f32.mxu0 0.0
  %876 = vmatmul.mubr.f32.gmra.mxu0 %v318
  %v877 = vpop.f32.mrf.mxu0
  %v878 = vadd.f32 %v149, %v877
  %v879 = vpop.f32.mrf.mxu0
  %880 = vmatprep.mubr.f32.mxu0 0.0
  %881 = vmatmul.mubr.f32.gmra.mxu0 %v321
  %v882 = vpop.f32.mrf.mxu0
  %v883 = vadd.f32 %v149, %v882
  %v884 = vpop.f32.mrf.mxu0
  %885 = vmatprep.mubr.f32.mxu0 0.0
  %886 = vmatmul.mubr.f32.gmra.mxu0 %v324
  %v887 = vpop.f32.mrf.mxu0
  %v888 = vadd.f32 %v149, %v887
  %v889 = vpop.f32.mrf.mxu0
  %890 = vmatprep.mubr.f32.mxu0 0.0
  %891 = vmatmul.mubr.f32.gmra.mxu0 %v327
  %v892 = vpop.f32.mrf.mxu0
  %v893 = vadd.f32 %v149, %v892
  %v894 = vpop.f32.mrf.mxu0
  %895 = vmatprep.mubr.f32.mxu0 0.0
  %896 = vmatmul.mubr.f32.gmra.mxu0 %v330
  %v897 = vpop.f32.mrf.mxu0
  %v898 = vadd.f32 %v149, %v897
  %v899 = vpop.f32.mrf.mxu0
  %900 = vmatprep.mubr.f32.mxu0 0.0
  %901 = vmatmul.mubr.f32.gmra.mxu0 %v333
  %v902 = vpop.f32.mrf.mxu0
  %v903 = vadd.f32 %v149, %v902
  %v904 = vpop.f32.mrf.mxu0
  %905 = vmatprep.mubr.f32.mxu0 0.0
  %906 = vmatmul.mubr.f32.gmra.mxu0 %v336
  %v907 = vpop.f32.mrf.mxu0
  %v908 = vadd.f32 %v149, %v907
  %v909 = vpop.f32.mrf.mxu0
  %910 = vmatprep.mubr.f32.mxu0 0.0
  %911 = vmatmul.mubr.f32.gmra.mxu0 %v339
  %v912 = vpop.f32.mrf.mxu0
  %v913 = vadd.f32 %v149, %v912
  %v914 = vpop.f32.mrf.mxu0
  %915 = vmatprep.mubr.f32.mxu0 0.0
  %916 = vmatmul.mubr.f32.gmra.mxu0 %v342
  %v917 = vpop.f32.mrf.mxu0
  %v918 = vadd.f32 %v149, %v917
  %v919 = vpop.f32.mrf.mxu0
  %920 = vmatprep.mubr.f32.mxu0 0.0
  %921 = vmatmul.mubr.f32.gmra.mxu0 %v345
  %v922 = vpop.f32.mrf.mxu0
  %v923 = vadd.f32 %v149, %v922
  %v924 = vpop.f32.mrf.mxu0
  %925 = vmatprep.mubr.f32.mxu0 0.0
  %926 = vmatmul.mubr.f32.gmra.mxu0 %v348
  %v927 = vpop.f32.mrf.mxu0
  %v928 = vadd.f32 %v149, %v927
  %v929 = vpop.f32.mrf.mxu0
  %930 = vmatprep.mubr.f32.mxu0 0.0
  %931 = vmatmul.mubr.f32.gmra.mxu0 %v351
  %v932 = vpop.f32.mrf.mxu0
  %v933 = vadd.f32 %v149, %v932
  %v934 = vpop.f32.mrf.mxu0
  %935 = vmatprep.mubr.f32.mxu0 0.0
  %936 = vmatmul.mubr.f32.gmra.mxu0 %v354
  %v937 = vpop.f32.mrf.mxu0
  %v938 = vadd.f32 %v149, %v937
  %v939 = vpop.f32.mrf.mxu0
  %940 = vmatprep.mubr.f32.mxu0 0.0
  %941 = vmatmul.mubr.f32.gmra.mxu0 %v357
  %v942 = vpop.f32.mrf.mxu0
  %v943 = vadd.f32 %v149, %v942
  %v944 = vpop.f32.mrf.mxu0
  %945 = vmatprep.mubr.f32.mxu0 0.0
  %946 = vmatmul.mubr.f32.gmra.mxu0 %v360
  %v947 = vpop.f32.mrf.mxu0
  %v948 = vadd.f32 %v149, %v947
  %v949 = vpop.f32.mrf.mxu0
  %950 = vmatprep.mubr.f32.mxu0 0.0
  %951 = vmatmul.mubr.f32.gmra.mxu0 %v363
  %v952 = vpop.f32.mrf.mxu0
  %v953 = vadd.f32 %v149, %v952
  %v954 = vpop.f32.mrf.mxu0
  %955 = vmatprep.mubr.f32.mxu0 0.0
  %956 = vmatmul.mubr.f32.gmra.mxu0 %v366
  %v957 = vpop.f32.mrf.mxu0
  %v958 = vadd.f32 %v149, %v957
  %v959 = vpop.f32.mrf.mxu0
  %960 = vmatprep.mubr.f32.mxu0 0.0
  %961 = vmatmul.mubr.f32.gmra.mxu0 %v369
  %v962 = vpop.f32.mrf.mxu0
  %v963 = vadd.f32 %v149, %v962
  %v964 = vpop.f32.mrf.mxu0
  %965 = vmatprep.mubr.f32.mxu0 0.0
  %966 = vmatmul.mubr.f32.gmra.mxu0 %v372
  %v967 = vpop.f32.mrf.mxu0
  %v968 = vadd.f32 %v149, %v967
  %v969 = vpop.f32.mrf.mxu0
  %970 = vmatprep.mubr.f32.mxu0 0.0
  %971 = vmatmul.mubr.f32.gmra.mxu0 %v375
  %v972 = vpop.f32.mrf.mxu0
  %v973 = vadd.f32 %v149, %v972
  %v974 = vpop.f32.mrf.mxu0
  %975 = vmatprep.mubr.f32.mxu0 0.0
  %976 = vmatmul.mubr.f32.gmra.mxu0 %v378
  %v977 = vpop.f32.mrf.mxu0
  %v978 = vadd.f32 %v149, %v977
  %v979 = vpop.f32.mrf.mxu0
  %980 = vmatprep.mubr.f32.mxu0 0.0
  %981 = vmatmul.mubr.f32.gmra.mxu0 %v381
  %v982 = vpop.f32.mrf.mxu0
  %v983 = vadd.f32 %v149, %v982
  %v984 = vpop.f32.mrf.mxu0
  %985 = vmatprep.mubr.f32.mxu0 0.0
  %986 = vmatmul.mubr.f32.gmra.mxu0 %v384
  %v987 = vpop.f32.mrf.mxu0
  %v988 = vadd.f32 %v149, %v987
  %v989 = vpop.f32.mrf.mxu0
  %990 = vmatprep.mubr.f32.mxu0 0.0
  %991 = vmatmul.mubr.f32.gmra.mxu0 %v387
  %v992 = vpop.f32.mrf.mxu0
  %v993 = vadd.f32 %v149, %v992
  %v994 = vpop.f32.mrf.mxu0
  %995 = vmatprep.mubr.f32.mxu0 0.0
  %996 = vmatmul.mubr.f32.gmra.mxu0 %v390
  %v997 = vpop.f32.mrf.mxu0
  %v998 = vadd.f32 %v149, %v997
  %v999 = vpop.f32.mrf.mxu0
  %1000 = vmatprep.mubr.f32.mxu0 0.0
  %1001 = vmatmul.mubr.f32.gmra.mxu0 %v393
  %v1002 = vpop.f32.mrf.mxu0
  %v1003 = vadd.f32 %v149, %v1002
  %v1004 = vpop.f32.mrf.mxu0
  %1005 = vmatprep.mubr.f32.mxu0 0.0
  %1006 = vmatmul.mubr.f32.gmra.mxu0 %v396
  %v1007 = vpop.f32.mrf.mxu0
  %v1008 = vadd.f32 %v149, %v1007
  %v1009 = vpop.f32.mrf.mxu0
  %1010 = vmatprep.mubr.f32.mxu0 0.0
  %1011 = vmatmul.mubr.f32.gmra.mxu0 %v399
  %v1012 = vpop.f32.mrf.mxu0
  %v1013 = vadd.f32 %v149, %v1012
  %v1014 = vpop.f32.mrf.mxu0
  %1015 = vmatprep.mubr.f32.mxu0 0.0
  %1016 = vmatmul.mubr.f32.gmra.mxu0 %v402
  %v1017 = vpop.f32.mrf.mxu0
  %v1018 = vadd.f32 %v149, %v1017
  %v1019 = vpop.f32.mrf.mxu0
  %1020 = vmatprep.mubr.f32.mxu0 0.0
  %1021 = vmatmul.mubr.f32.gmra.mxu0 %v405
  %v1022 = vpop.f32.mrf.mxu0
  %v1023 = vadd.f32 %v149, %v1022
  %v1024 = vpop.f32.mrf.mxu0
  %1025 = vmatprep.mubr.f32.mxu0 0.0
  %1026 = vmatmul.mubr.f32.gmra.mxu0 %v408
  %v1027 = vpop.f32.mrf.mxu0
  %v1028 = vadd.f32 %v149, %v1027
  %v1029 = vpop.f32.mrf.mxu0
  %1030 = vmatprep.mubr.f32.mxu0 0.0
  %1031 = vmatmul.mubr.f32.gmra.mxu0 %v411
  %v1032 = vpop.f32.mrf.mxu0
  %v1033 = vadd.f32 %v149, %v1032
  %v1034 = vpop.f32.mrf.mxu0
  %1035 = vmatprep.mubr.f32.mxu0 0.0
  %1036 = vmatmul.mubr.f32.gmra.mxu0 %v414
  %v1037 = vpop.f32.mrf.mxu0
  %v1038 = vadd.f32 %v149, %v1037
  %v1039 = vpop.f32.mrf.mxu0
  %1040 = vmatprep.mubr.f32.mxu0 0.0
  %1041 = vmatmul.mubr.f32.gmra.mxu0 %v417
  %v1042 = vpop.f32.mrf.mxu0
  %v1043 = vadd.f32 %v149, %v1042
  %v1044 = vpop.f32.mrf.mxu0
  %1045 = vmatprep.mubr.f32.mxu0 0.0
  %1046 = vmatmul.mubr.f32.gmra.mxu0 %v420
  %v1047 = vpop.f32.mrf.mxu0
  %v1048 = vadd.f32 %v149, %v1047
  %v1049 = vpop.f32.mrf.mxu0
  %1050 = vmatprep.mubr.f32.mxu0 0.0
  %1051 = vmatmul.mubr.f32.gmra.mxu0 %v423
  %v1052 = vpop.f32.mrf.mxu0
  %v1053 = vadd.f32 %v149, %v1052
  %v1054 = vpop.f32.mrf.mxu0
  %1055 = vmatprep.mubr.f32.mxu0 0.0
  %1056 = vmatmul.mubr.f32.gmra.mxu0 %v426
  %v1057 = vpop.f32.mrf.mxu0
  %v1058 = vadd.f32 %v149, %v1057
  %v1059 = vpop.f32.mrf.mxu0
  %1060 = vmatprep.mubr.f32.mxu0 0.0
  %1061 = vmatmul.mubr.f32.gmra.mxu0 %v429
  %v1062 = vpop.f32.mrf.mxu0
  %v1063 = vadd.f32 %v149, %v1062
  %v1064 = vpop.f32.mrf.mxu0
  %1065 = vmatprep.mubr.f32.mxu0 0.0
  %1066 = vmatmul.mubr.f32.gmra.mxu0 %v432
  %v1067 = vpop.f32.mrf.mxu0
  %v1068 = vadd.f32 %v149, %v1067
  %v1069 = vpop.f32.mrf.mxu0
  %1070 = vmatprep.mubr.f32.mxu0 0.0
  %1071 = vmatmul.mubr.f32.gmra.mxu0 %v435
  %v1072 = vpop.f32.mrf.mxu0
  %v1073 = vadd.f32 %v149, %v1072
  %v1074 = vpop.f32.mrf.mxu0
  %1075 = vmatprep.mubr.f32.mxu0 0.0
  %1076 = vmatmul.mubr.f32.gmra.mxu0 %v438
  %v1077 = vpop.f32.mrf.mxu0
  %v1078 = vadd.f32 %v149, %v1077
  %v1079 = vpop.f32.mrf.mxu0
  %1080 = vmatprep.mubr.f32.mxu0 0.0
  %1081 = vmatmul.mubr.f32.gmra.mxu0 %v441
  %v1082 = vpop.f32.mrf.mxu0
  %v1083 = vadd.f32 %v149, %v1082
  %v1084 = vpop.f32.mrf.mxu0
  %1085 = vmatprep.mubr.f32.mxu0 0.0
  %1086 = vmatmul.mubr.f32.gmra.mxu0 %v444
  %v1087 = vpop.f32.mrf.mxu0
  %v1088 = vadd.f32 %v149, %v1087
  %v1089 = vpop.f32.mrf.mxu0
  %1090 = vmatprep.mubr.f32.mxu0 0.0
  %1091 = vmatmul.mubr.f32.gmra.mxu0 %v447
  %v1092 = vpop.f32.mrf.mxu0
  %v1093 = vadd.f32 %v149, %v1092
  %v1094 = vpop.f32.mrf.mxu0
  %1095 = vmatprep.mubr.f32.mxu0 0.0
  %1096 = vmatmul.mubr.f32.gmra.mxu0 %v450
  %v1097 = vpop.f32.mrf.mxu0
  %v1098 = vadd.f32 %v149, %v1097
  %v1099 = vpop.f32.mrf.mxu0
  %1100 = vmatprep.mubr.f32.mxu0 0.0
  %1101 = vmatmul.mubr.f32.gmra.mxu0 %v453
  %v1102 = vpop.f32.mrf.mxu0
  %v1103 = vadd.f32 %v149, %v1102
  %v1104 = vpop.f32.mrf.mxu0
  %1105 = vmatprep.mubr.f32.mxu0 0.0
  %1106 = vmatmul.mubr.f32.gmra.mxu0 %v456
  %v1107 = vpop.f32.mrf.mxu0
  %v1108 = vadd.f32 %v149, %v1107
  %v1109 = vpop.f32.mrf.mxu0
  %1110 = vmatprep.mubr.f32.mxu0 0.0
  %1111 = vmatmul.mubr.f32.gmra.mxu0 %v459
  %v1112 = vpop.f32.mrf.mxu0
  %v1113 = vadd.f32 %v149, %v1112
  %v1114 = vpop.f32.mrf.mxu0
  %1115 = vmatprep.mubr.f32.mxu0 0.0
  %1116 = vmatmul.mubr.f32.gmra.mxu0 %v462
  %v1117 = vpop.f32.mrf.mxu0
  %v1118 = vadd.f32 %v149, %v1117
  %v1119 = vpop.f32.mrf.mxu0
  %1120 = vmatprep.mubr.f32.mxu0 0.0
  %1121 = vmatmul.mubr.f32.gmra.mxu0 %v465
  %v1122 = vpop.f32.mrf.mxu0
  %v1123 = vadd.f32 %v149, %v1122
  %v1124 = vpop.f32.mrf.mxu0
  %1125 = vmatprep.mubr.f32.mxu0 0.0
  %1126 = vmatmul.mubr.f32.gmra.mxu0 %v468
  %v1127 = vpop.f32.mrf.mxu0
  %v1128 = vadd.f32 %v149, %v1127
  %v1129 = vpop.f32.mrf.mxu0
  %1130 = vmatprep.mubr.f32.mxu0 0.0
  %1131 = vmatmul.mubr.f32.gmra.mxu0 %v471
  %v1132 = vpop.f32.mrf.mxu0
  %v1133 = vadd.f32 %v149, %v1132
  %v1134 = vpop.f32.mrf.mxu0
  %1135 = vmatprep.mubr.f32.mxu0 0.0
  %1136 = vmatmul.mubr.f32.gmra.mxu0 %v474
  %v1137 = vpop.f32.mrf.mxu0
  %v1138 = vadd.f32 %v149, %v1137
  %v1139 = vpop.f32.mrf.mxu0
  %1140 = vmatprep.mubr.f32.mxu0 0.0
  %1141 = vmatmul.mubr.f32.gmra.mxu0 %v477
  %v1142 = vpop.f32.mrf.mxu0
  %v1143 = vadd.f32 %v149, %v1142
  %v1144 = vpop.f32.mrf.mxu0
  %1145 = vmatprep.mubr.f32.mxu0 0.0
  %1146 = vmatmul.mubr.f32.gmra.mxu0 %v480
  %v1147 = vpop.f32.mrf.mxu0
  %v1148 = vadd.f32 %v149, %v1147
  %v1149 = vpop.f32.mrf.mxu0
  %1150 = vmatprep.mubr.f32.mxu0 0.0
  %1151 = vmatmul.mubr.f32.gmra.mxu0 %v483
  %v1152 = vpop.f32.mrf.mxu0
  %v1153 = vadd.f32 %v149, %v1152
  %v1154 = vpop.f32.mrf.mxu0
  %1155 = vmatprep.mubr.f32.mxu0 0.0
  %1156 = vmatmul.mubr.f32.gmra.mxu0 %v486
  %v1157 = vpop.f32.mrf.mxu0
  %v1158 = vadd.f32 %v149, %v1157
  %v1159 = vpop.f32.mrf.mxu0
  %1160 = vmatprep.mubr.f32.mxu0 0.0
  %1161 = vmatmul.mubr.f32.gmra.mxu0 %v489
  %v1162 = vpop.f32.mrf.mxu0
  %v1163 = vadd.f32 %v149, %v1162
  %v1164 = vpop.f32.mrf.mxu0
  %1165 = vmatprep.mubr.f32.mxu0 0.0
  %1166 = vmatmul.mubr.f32.gmra.mxu0 %v492
  %v1167 = vpop.f32.mrf.mxu0
  %v1168 = vadd.f32 %v149, %v1167
  %v1169 = vpop.f32.mrf.mxu0
  %1170 = vmatprep.mubr.f32.mxu0 0.0
  %1171 = vmatmul.mubr.f32.gmra.mxu0 %v495
  %v1172 = vpop.f32.mrf.mxu0
  %v1173 = vadd.f32 %v149, %v1172
  %v1174 = vpop.f32.mrf.mxu0
  %1175 = vmatprep.mubr.f32.mxu0 0.0
  %1176 = vmatmul.mubr.f32.gmra.mxu0 %v498
  %v1177 = vpop.f32.mrf.mxu0
  %v1178 = vadd.f32 %v149, %v1177
  %v1179 = vpop.f32.mrf.mxu0
  %1180 = vmatprep.mubr.f32.mxu0 0.0
  %1181 = vmatmul.mubr.f32.gmra.mxu0 %v501
  %v1182 = vpop.f32.mrf.mxu0
  %v1183 = vadd.f32 %v149, %v1182
  %v1184 = vpop.f32.mrf.mxu0
  %1185 = vmatprep.mubr.f32.mxu0 0.0
  %1186 = vmatmul.mubr.f32.gmra.mxu0 %v504
  %v1187 = vpop.f32.mrf.mxu0
  %v1188 = vadd.f32 %v149, %v1187
  %v1189 = vpop.f32.mrf.mxu0
  %1190 = vmatprep.mubr.f32.mxu0 0.0
  %1191 = vmatmul.mubr.f32.gmra.mxu0 %v507
  %v1192 = vpop.f32.mrf.mxu0
  %v1193 = vadd.f32 %v149, %v1192
  %v1194 = vpop.f32.mrf.mxu0
  %1195 = vmatprep.mubr.f32.mxu0 0.0
  %1196 = vmatmul.mubr.f32.gmra.mxu0 %v510
  %v1197 = vpop.f32.mrf.mxu0
  %v1198 = vadd.f32 %v149, %v1197
  %v1199 = vpop.f32.mrf.mxu0
  %1200 = vmatprep.mubr.f32.mxu0 0.0
  %1201 = vmatmul.mubr.f32.gmra.mxu0 %v513
  %v1202 = vpop.f32.mrf.mxu0
  %v1203 = vadd.f32 %v149, %v1202
  %v1204 = vpop.f32.mrf.mxu0
  %1205 = vmatprep.mubr.f32.mxu0 0.0
  %1206 = vmatmul.mubr.f32.gmra.mxu0 %v516
  %v1207 = vpop.f32.mrf.mxu0
  %v1208 = vadd.f32 %v149, %v1207
  %v1209 = vpop.f32.mrf.mxu0
  %1210 = vmatprep.mubr.f32.mxu0 0.0
  %1211 = vmatmul.mubr.f32.gmra.mxu0 %v519
  %v1212 = vpop.f32.mrf.mxu0
  %v1213 = vadd.f32 %v149, %v1212
  %v1214 = vpop.f32.mrf.mxu0
  %1215 = vmatprep.mubr.f32.mxu0 0.0
  %1216 = vmatmul.mubr.f32.gmra.mxu0 %v522
  %v1217 = vpop.f32.mrf.mxu0
  %v1218 = vadd.f32 %v149, %v1217
  %v1219 = vpop.f32.mrf.mxu0
  %1220 = vmatprep.mubr.f32.mxu0 0.0
  %1221 = vmatmul.mubr.f32.gmra.mxu0 %v525
  %v1222 = vpop.f32.mrf.mxu0
  %v1223 = vadd.f32 %v149, %v1222
  %v1224 = vpop.f32.mrf.mxu0
  %1225 = vmatprep.mubr.f32.mxu0 0.0
  %1226 = vmatmul.mubr.f32.gmra.mxu0 %v528
  %v1227 = vpop.f32.mrf.mxu0
  %v1228 = vadd.f32 %v149, %v1227
  %v1229 = vpop.f32.mrf.mxu0
  %1230 = vmatprep.mubr.f32.mxu0 0.0
  %1231 = vmatmul.mubr.f32.gmra.mxu0 %v531
  %v1232 = vpop.f32.mrf.mxu0
  %v1233 = vadd.f32 %v149, %v1232
  %v1234 = vpop.f32.mrf.mxu0
  %1235 = vmatprep.mubr.f32.mxu0 0.0
  %1236 = vmatmul.mubr.f32.gmra.mxu0 %v534
  %v1237 = vpop.f32.mrf.mxu0
  %v1238 = vadd.f32 %v149, %v1237
  %v1239 = vpop.f32.mrf.mxu0
  %1240 = vdwg.mxu0
  %v1241 = vmax.f32 %v603, 0.0
  %v1242 = vmax.f32 %v608, 0.0
  %v1243 = vmax.f32 %v613, 0.0
  %v1244 = vmax.f32 %v618, 0.0
  %v1245 = vmax.f32 %v623, 0.0
  %v1246 = vmax.f32 %v628, 0.0
  %v1247 = vmax.f32 %v633, 0.0
  %v1248 = vmax.f32 %v638, 0.0
  %v1249 = vmax.f32 %v643, 0.0
  %v1250 = vmax.f32 %v648, 0.0
  %v1251 = vmax.f32 %v653, 0.0
  %v1252 = vmax.f32 %v658, 0.0
  %v1253 = vmax.f32 %v663, 0.0
  %v1254 = vmax.f32 %v668, 0.0
  %v1255 = vmax.f32 %v673, 0.0
  %v1256 = vmax.f32 %v678, 0.0
  %v1257 = vmax.f32 %v683, 0.0
  %v1258 = vmax.f32 %v688, 0.0
  %v1259 = vmax.f32 %v693, 0.0
  %v1260 = vmax.f32 %v698, 0.0
  %v1261 = vmax.f32 %v703, 0.0
  %v1262 = vmax.f32 %v708, 0.0
  %v1263 = vmax.f32 %v713, 0.0
  %v1264 = vmax.f32 %v718, 0.0
  %v1265 = vmax.f32 %v723, 0.0
  %v1266 = vmax.f32 %v728, 0.0
  %v1267 = vmax.f32 %v733, 0.0
  %v1268 = vmax.f32 %v738, 0.0
  %v1269 = vmax.f32 %v743, 0.0
  %v1270 = vmax.f32 %v748, 0.0
  %v1271 = vmax.f32 %v753, 0.0
  %v1272 = vmax.f32 %v758, 0.0
  %v1273 = vmax.f32 %v763, 0.0
  %v1274 = vmax.f32 %v768, 0.0
  %v1275 = vmax.f32 %v773, 0.0
  %v1276 = vmax.f32 %v778, 0.0
  %v1277 = vmax.f32 %v783, 0.0
  %v1278 = vmax.f32 %v788, 0.0
  %v1279 = vmax.f32 %v793, 0.0
  %v1280 = vmax.f32 %v798, 0.0
  %v1281 = vmax.f32 %v803, 0.0
  %v1282 = vmax.f32 %v808, 0.0
  %v1283 = vmax.f32 %v813, 0.0
  %v1284 = vmax.f32 %v818, 0.0
  %v1285 = vmax.f32 %v823, 0.0
  %v1286 = vmax.f32 %v828, 0.0
  %v1287 = vmax.f32 %v833, 0.0
  %v1288 = vmax.f32 %v838, 0.0
  %v1289 = vmax.f32 %v843, 0.0
  %v1290 = vmax.f32 %v848, 0.0
  %v1291 = vmax.f32 %v853, 0.0
  %v1292 = vmax.f32 %v858, 0.0
  %v1293 = vmax.f32 %v863, 0.0
  %v1294 = vmax.f32 %v868, 0.0
  %v1295 = vmax.f32 %v873, 0.0
  %v1296 = vmax.f32 %v878, 0.0
  %v1297 = vmax.f32 %v883, 0.0
  %v1298 = vmax.f32 %v888, 0.0
  %v1299 = vmax.f32 %v893, 0.0
  %v1300 = vmax.f32 %v898, 0.0
  %v1301 = vmax.f32 %v903, 0.0
  %v1302 = vmax.f32 %v908, 0.0
  %v1303 = vmax.f32 %v913, 0.0
  %v1304 = vmax.f32 %v918, 0.0
  %v1305 = vmax.f32 %v923, 0.0
  %v1306 = vmax.f32 %v928, 0.0
  %v1307 = vmax.f32 %v933, 0.0
  %v1308 = vmax.f32 %v938, 0.0
  %v1309 = vmax.f32 %v943, 0.0
  %v1310 = vmax.f32 %v948, 0.0
  %v1311 = vmax.f32 %v953, 0.0
  %v1312 = vmax.f32 %v958, 0.0
  %v1313 = vmax.f32 %v963, 0.0
  %v1314 = vmax.f32 %v968, 0.0
  %v1315 = vmax.f32 %v973, 0.0
  %v1316 = vmax.f32 %v978, 0.0
  %v1317 = vmax.f32 %v983, 0.0
  %v1318 = vmax.f32 %v988, 0.0
  %v1319 = vmax.f32 %v993, 0.0
  %v1320 = vmax.f32 %v998, 0.0
  %v1321 = vmax.f32 %v1003, 0.0
  %v1322 = vmax.f32 %v1008, 0.0
  %v1323 = vmax.f32 %v1013, 0.0
  %v1324 = vmax.f32 %v1018, 0.0
  %v1325 = vmax.f32 %v1023, 0.0
  %v1326 = vmax.f32 %v1028, 0.0
  %v1327 = vmax.f32 %v1033, 0.0
  %v1328 = vmax.f32 %v1038, 0.0
  %v1329 = vmax.f32 %v1043, 0.0
  %v1330 = vmax.f32 %v1048, 0.0
  %v1331 = vmax.f32 %v1053, 0.0
  %v1332 = vmax.f32 %v1058, 0.0
  %v1333 = vmax.f32 %v1063, 0.0
  %v1334 = vmax.f32 %v1068, 0.0
  %v1335 = vmax.f32 %v1073, 0.0
  %v1336 = vmax.f32 %v1078, 0.0
  %v1337 = vmax.f32 %v1083, 0.0
  %v1338 = vmax.f32 %v1088, 0.0
  %v1339 = vmax.f32 %v1093, 0.0
  %v1340 = vmax.f32 %v1098, 0.0
  %v1341 = vmax.f32 %v1103, 0.0
  %v1342 = vmax.f32 %v1108, 0.0
  %v1343 = vmax.f32 %v1113, 0.0
  %v1344 = vmax.f32 %v1118, 0.0
  %v1345 = vmax.f32 %v1123, 0.0
  %v1346 = vmax.f32 %v1128, 0.0
  %v1347 = vmax.f32 %v1133, 0.0
  %v1348 = vmax.f32 %v1138, 0.0
  %v1349 = vmax.f32 %v1143, 0.0
  %v1350 = vmax.f32 %v1148, 0.0
  %v1351 = vmax.f32 %v1153, 0.0
  %v1352 = vmax.f32 %v1158, 0.0
  %v1353 = vmax.f32 %v1163, 0.0
  %v1354 = vmax.f32 %v1168, 0.0
  %v1355 = vmax.f32 %v1173, 0.0
  %v1356 = vmax.f32 %v1178, 0.0
  %v1357 = vmax.f32 %v1183, 0.0
  %v1358 = vmax.f32 %v1188, 0.0
  %v1359 = vmax.f32 %v1193, 0.0
  %v1360 = vmax.f32 %v1198, 0.0
  %v1361 = vmax.f32 %v1203, 0.0
  %v1362 = vmax.f32 %v1208, 0.0
  %v1363 = vmax.f32 %v1213, 0.0
  %v1364 = vmax.f32 %v1218, 0.0
  %v1365 = vmax.f32 %v1223, 0.0
  %v1366 = vmax.f32 %v1228, 0.0
  %v1367 = vmax.f32 %v1233, 0.0
  %v1368 = vmax.f32 %v1238, 0.0
  %vm1369 = vcmask 523264
  %v1370 = vsel %vm1369, %v1241, -inf
  %v1371 = vsel %vm1369, %v1242, -inf
  %v1372 = vmax.f32 %v1370, %v1371
  %v1373 = vrot.slane %v1372, 4
  %v1374 = vmax.f32 %v1372, %v1373
  %v1375 = vrot.slane %v1374, 2
  %v1376 = vmax.f32 %v1374, %v1375
  %v1377 = vrot.slane %v1376, 1
  %v1378 = vmax.f32 %v1376, %v1377
  %v1379 = vsel %vm1369, %v1243, -inf
  %v1380 = vsel %vm1369, %v1244, -inf
  %v1381 = vmax.f32 %v1379, %v1380
  %v1382 = vrot.slane %v1381, 4
  %v1383 = vmax.f32 %v1381, %v1382
  %v1384 = vrot.slane %v1383, 2
  %v1385 = vmax.f32 %v1383, %v1384
  %v1386 = vrot.slane %v1385, 1
  %v1387 = vmax.f32 %v1385, %v1386
  %v1388 = vsel %vm1369, %v1245, -inf
  %v1389 = vsel %vm1369, %v1246, -inf
  %v1390 = vmax.f32 %v1388, %v1389
  %v1391 = vrot.slane %v1390, 4
  %v1392 = vmax.f32 %v1390, %v1391
  %v1393 = vrot.slane %v1392, 2
  %v1394 = vmax.f32 %v1392, %v1393
  %v1395 = vrot.slane %v1394, 1
  %v1396 = vmax.f32 %v1394, %v1395
  %v1397 = vsel %vm1369, %v1247, -inf
  %v1398 = vsel %vm1369, %v1248, -inf
  %v1399 = vmax.f32 %v1397, %v1398
  %v1400 = vrot.slane %v1399, 4
  %v1401 = vmax.f32 %v1399, %v1400
  %v1402 = vrot.slane %v1401, 2
  %v1403 = vmax.f32 %v1401, %v1402
  %v1404 = vrot.slane %v1403, 1
  %v1405 = vmax.f32 %v1403, %v1404
  %v1406 = vsel %vm1369, %v1249, -inf
  %v1407 = vsel %vm1369, %v1250, -inf
  %v1408 = vmax.f32 %v1406, %v1407
  %v1409 = vrot.slane %v1408, 4
  %v1410 = vmax.f32 %v1408, %v1409
  %v1411 = vrot.slane %v1410, 2
  %v1412 = vmax.f32 %v1410, %v1411
  %v1413 = vrot.slane %v1412, 1
  %v1414 = vmax.f32 %v1412, %v1413
  %v1415 = vsel %vm1369, %v1251, -inf
  %v1416 = vsel %vm1369, %v1252, -inf
  %v1417 = vmax.f32 %v1415, %v1416
  %v1418 = vrot.slane %v1417, 4
  %v1419 = vmax.f32 %v1417, %v1418
  %v1420 = vrot.slane %v1419, 2
  %v1421 = vmax.f32 %v1419, %v1420
  %v1422 = vrot.slane %v1421, 1
  %v1423 = vmax.f32 %v1421, %v1422
  %v1424 = vsel %vm1369, %v1253, -inf
  %v1425 = vsel %vm1369, %v1254, -inf
  %v1426 = vmax.f32 %v1424, %v1425
  %v1427 = vrot.slane %v1426, 4
  %v1428 = vmax.f32 %v1426, %v1427
  %v1429 = vrot.slane %v1428, 2
  %v1430 = vmax.f32 %v1428, %v1429
  %v1431 = vrot.slane %v1430, 1
  %v1432 = vmax.f32 %v1430, %v1431
  %v1433 = vsel %vm1369, %v1255, -inf
  %v1434 = vsel %vm1369, %v1256, -inf
  %v1435 = vmax.f32 %v1433, %v1434
  %v1436 = vrot.slane %v1435, 4
  %v1437 = vmax.f32 %v1435, %v1436
  %v1438 = vrot.slane %v1437, 2
  %v1439 = vmax.f32 %v1437, %v1438
  %v1440 = vrot.slane %v1439, 1
  %v1441 = vmax.f32 %v1439, %v1440
  %v1442 = vsel %vm1369, %v1257, -inf
  %v1443 = vsel %vm1369, %v1258, -inf
  %v1444 = vmax.f32 %v1442, %v1443
  %v1445 = vrot.slane %v1444, 4
  %v1446 = vmax.f32 %v1444, %v1445
  %v1447 = vrot.slane %v1446, 2
  %v1448 = vmax.f32 %v1446, %v1447
  %v1449 = vrot.slane %v1448, 1
  %v1450 = vmax.f32 %v1448, %v1449
  %v1451 = vsel %vm1369, %v1259, -inf
  %v1452 = vsel %vm1369, %v1260, -inf
  %v1453 = vmax.f32 %v1451, %v1452
  %v1454 = vrot.slane %v1453, 4
  %v1455 = vmax.f32 %v1453, %v1454
  %v1456 = vrot.slane %v1455, 2
  %v1457 = vmax.f32 %v1455, %v1456
  %v1458 = vrot.slane %v1457, 1
  %v1459 = vmax.f32 %v1457, %v1458
  %v1460 = vsel %vm1369, %v1261, -inf
  %v1461 = vsel %vm1369, %v1262, -inf
  %v1462 = vmax.f32 %v1460, %v1461
  %v1463 = vrot.slane %v1462, 4
  %v1464 = vmax.f32 %v1462, %v1463
  %v1465 = vrot.slane %v1464, 2
  %v1466 = vmax.f32 %v1464, %v1465
  %v1467 = vrot.slane %v1466, 1
  %v1468 = vmax.f32 %v1466, %v1467
  %v1469 = vsel %vm1369, %v1263, -inf
  %v1470 = vsel %vm1369, %v1264, -inf
  %v1471 = vmax.f32 %v1469, %v1470
  %v1472 = vrot.slane %v1471, 4
  %v1473 = vmax.f32 %v1471, %v1472
  %v1474 = vrot.slane %v1473, 2
  %v1475 = vmax.f32 %v1473, %v1474
  %v1476 = vrot.slane %v1475, 1
  %v1477 = vmax.f32 %v1475, %v1476
  %v1478 = vsel %vm1369, %v1265, -inf
  %v1479 = vsel %vm1369, %v1266, -inf
  %v1480 = vmax.f32 %v1478, %v1479
  %v1481 = vrot.slane %v1480, 4
  %v1482 = vmax.f32 %v1480, %v1481
  %v1483 = vrot.slane %v1482, 2
  %v1484 = vmax.f32 %v1482, %v1483
  %v1485 = vrot.slane %v1484, 1
  %v1486 = vmax.f32 %v1484, %v1485
  %v1487 = vsel %vm1369, %v1267, -inf
  %v1488 = vsel %vm1369, %v1268, -inf
  %v1489 = vmax.f32 %v1487, %v1488
  %v1490 = vrot.slane %v1489, 4
  %v1491 = vmax.f32 %v1489, %v1490
  %v1492 = vrot.slane %v1491, 2
  %v1493 = vmax.f32 %v1491, %v1492
  %v1494 = vrot.slane %v1493, 1
  %v1495 = vmax.f32 %v1493, %v1494
  %v1496 = vsel %vm1369, %v1269, -inf
  %v1497 = vsel %vm1369, %v1270, -inf
  %v1498 = vmax.f32 %v1496, %v1497
  %v1499 = vrot.slane %v1498, 4
  %v1500 = vmax.f32 %v1498, %v1499
  %v1501 = vrot.slane %v1500, 2
  %v1502 = vmax.f32 %v1500, %v1501
  %v1503 = vrot.slane %v1502, 1
  %v1504 = vmax.f32 %v1502, %v1503
  %v1505 = vsel %vm1369, %v1271, -inf
  %v1506 = vsel %vm1369, %v1272, -inf
  %v1507 = vmax.f32 %v1505, %v1506
  %v1508 = vrot.slane %v1507, 4
  %v1509 = vmax.f32 %v1507, %v1508
  %v1510 = vrot.slane %v1509, 2
  %v1511 = vmax.f32 %v1509, %v1510
  %v1512 = vrot.slane %v1511, 1
  %v1513 = vmax.f32 %v1511, %v1512
  %v1514 = vsel %vm1369, %v1273, -inf
  %v1515 = vsel %vm1369, %v1274, -inf
  %v1516 = vmax.f32 %v1514, %v1515
  %v1517 = vrot.slane %v1516, 4
  %v1518 = vmax.f32 %v1516, %v1517
  %v1519 = vrot.slane %v1518, 2
  %v1520 = vmax.f32 %v1518, %v1519
  %v1521 = vrot.slane %v1520, 1
  %v1522 = vmax.f32 %v1520, %v1521
  %v1523 = vsel %vm1369, %v1275, -inf
  %v1524 = vsel %vm1369, %v1276, -inf
  %v1525 = vmax.f32 %v1523, %v1524
  %v1526 = vrot.slane %v1525, 4
  %v1527 = vmax.f32 %v1525, %v1526
  %v1528 = vrot.slane %v1527, 2
  %v1529 = vmax.f32 %v1527, %v1528
  %v1530 = vrot.slane %v1529, 1
  %v1531 = vmax.f32 %v1529, %v1530
  %v1532 = vsel %vm1369, %v1277, -inf
  %v1533 = vsel %vm1369, %v1278, -inf
  %v1534 = vmax.f32 %v1532, %v1533
  %v1535 = vrot.slane %v1534, 4
  %v1536 = vmax.f32 %v1534, %v1535
  %v1537 = vrot.slane %v1536, 2
  %v1538 = vmax.f32 %v1536, %v1537
  %v1539 = vrot.slane %v1538, 1
  %v1540 = vmax.f32 %v1538, %v1539
  %v1541 = vsel %vm1369, %v1279, -inf
  %v1542 = vsel %vm1369, %v1280, -inf
  %v1543 = vmax.f32 %v1541, %v1542
  %v1544 = vrot.slane %v1543, 4
  %v1545 = vmax.f32 %v1543, %v1544
  %v1546 = vrot.slane %v1545, 2
  %v1547 = vmax.f32 %v1545, %v1546
  %v1548 = vrot.slane %v1547, 1
  %v1549 = vmax.f32 %v1547, %v1548
  %v1550 = vsel %vm1369, %v1281, -inf
  %v1551 = vsel %vm1369, %v1282, -inf
  %v1552 = vmax.f32 %v1550, %v1551
  %v1553 = vrot.slane %v1552, 4
  %v1554 = vmax.f32 %v1552, %v1553
  %v1555 = vrot.slane %v1554, 2
  %v1556 = vmax.f32 %v1554, %v1555
  %v1557 = vrot.slane %v1556, 1
  %v1558 = vmax.f32 %v1556, %v1557
  %v1559 = vsel %vm1369, %v1283, -inf
  %v1560 = vsel %vm1369, %v1284, -inf
  %v1561 = vmax.f32 %v1559, %v1560
  %v1562 = vrot.slane %v1561, 4
  %v1563 = vmax.f32 %v1561, %v1562
  %v1564 = vrot.slane %v1563, 2
  %v1565 = vmax.f32 %v1563, %v1564
  %v1566 = vrot.slane %v1565, 1
  %v1567 = vmax.f32 %v1565, %v1566
  %v1568 = vsel %vm1369, %v1285, -inf
  %v1569 = vsel %vm1369, %v1286, -inf
  %v1570 = vmax.f32 %v1568, %v1569
  %v1571 = vrot.slane %v1570, 4
  %v1572 = vmax.f32 %v1570, %v1571
  %v1573 = vrot.slane %v1572, 2
  %v1574 = vmax.f32 %v1572, %v1573
  %v1575 = vrot.slane %v1574, 1
  %v1576 = vmax.f32 %v1574, %v1575
  %v1577 = vsel %vm1369, %v1287, -inf
  %v1578 = vsel %vm1369, %v1288, -inf
  %v1579 = vmax.f32 %v1577, %v1578
  %v1580 = vrot.slane %v1579, 4
  %v1581 = vmax.f32 %v1579, %v1580
  %v1582 = vrot.slane %v1581, 2
  %v1583 = vmax.f32 %v1581, %v1582
  %v1584 = vrot.slane %v1583, 1
  %v1585 = vmax.f32 %v1583, %v1584
  %v1586 = vsel %vm1369, %v1289, -inf
  %v1587 = vsel %vm1369, %v1290, -inf
  %v1588 = vmax.f32 %v1586, %v1587
  %v1589 = vrot.slane %v1588, 4
  %v1590 = vmax.f32 %v1588, %v1589
  %v1591 = vrot.slane %v1590, 2
  %v1592 = vmax.f32 %v1590, %v1591
  %v1593 = vrot.slane %v1592, 1
  %v1594 = vmax.f32 %v1592, %v1593
  %v1595 = vsel %vm1369, %v1291, -inf
  %v1596 = vsel %vm1369, %v1292, -inf
  %v1597 = vmax.f32 %v1595, %v1596
  %v1598 = vrot.slane %v1597, 4
  %v1599 = vmax.f32 %v1597, %v1598
  %v1600 = vrot.slane %v1599, 2
  %v1601 = vmax.f32 %v1599, %v1600
  %v1602 = vrot.slane %v1601, 1
  %v1603 = vmax.f32 %v1601, %v1602
  %v1604 = vsel %vm1369, %v1293, -inf
  %v1605 = vsel %vm1369, %v1294, -inf
  %v1606 = vmax.f32 %v1604, %v1605
  %v1607 = vrot.slane %v1606, 4
  %v1608 = vmax.f32 %v1606, %v1607
  %v1609 = vrot.slane %v1608, 2
  %v1610 = vmax.f32 %v1608, %v1609
  %v1611 = vrot.slane %v1610, 1
  %v1612 = vmax.f32 %v1610, %v1611
  %v1613 = vsel %vm1369, %v1295, -inf
  %v1614 = vsel %vm1369, %v1296, -inf
  %v1615 = vmax.f32 %v1613, %v1614
  %v1616 = vrot.slane %v1615, 4
  %v1617 = vmax.f32 %v1615, %v1616
  %v1618 = vrot.slane %v1617, 2
  %v1619 = vmax.f32 %v1617, %v1618
  %v1620 = vrot.slane %v1619, 1
  %v1621 = vmax.f32 %v1619, %v1620
  %v1622 = vsel %vm1369, %v1297, -inf
  %v1623 = vsel %vm1369, %v1298, -inf
  %v1624 = vmax.f32 %v1622, %v1623
  %v1625 = vrot.slane %v1624, 4
  %v1626 = vmax.f32 %v1624, %v1625
  %v1627 = vrot.slane %v1626, 2
  %v1628 = vmax.f32 %v1626, %v1627
  %v1629 = vrot.slane %v1628, 1
  %v1630 = vmax.f32 %v1628, %v1629
  %v1631 = vsel %vm1369, %v1299, -inf
  %v1632 = vsel %vm1369, %v1300, -inf
  %v1633 = vmax.f32 %v1631, %v1632
  %v1634 = vrot.slane %v1633, 4
  %v1635 = vmax.f32 %v1633, %v1634
  %v1636 = vrot.slane %v1635, 2
  %v1637 = vmax.f32 %v1635, %v1636
  %v1638 = vrot.slane %v1637, 1
  %v1639 = vmax.f32 %v1637, %v1638
  %v1640 = vsel %vm1369, %v1301, -inf
  %v1641 = vsel %vm1369, %v1302, -inf
  %v1642 = vmax.f32 %v1640, %v1641
  %v1643 = vrot.slane %v1642, 4
  %v1644 = vmax.f32 %v1642, %v1643
  %v1645 = vrot.slane %v1644, 2
  %v1646 = vmax.f32 %v1644, %v1645
  %v1647 = vrot.slane %v1646, 1
  %v1648 = vmax.f32 %v1646, %v1647
  %v1649 = vsel %vm1369, %v1303, -inf
  %v1650 = vsel %vm1369, %v1304, -inf
  %v1651 = vmax.f32 %v1649, %v1650
  %v1652 = vrot.slane %v1651, 4
  %v1653 = vmax.f32 %v1651, %v1652
  %v1654 = vrot.slane %v1653, 2
  %v1655 = vmax.f32 %v1653, %v1654
  %v1656 = vrot.slane %v1655, 1
  %v1657 = vmax.f32 %v1655, %v1656
  %v1658 = vsel %vm1369, %v1305, -inf
  %v1659 = vsel %vm1369, %v1306, -inf
  %v1660 = vmax.f32 %v1658, %v1659
  %v1661 = vrot.slane %v1660, 4
  %v1662 = vmax.f32 %v1660, %v1661
  %v1663 = vrot.slane %v1662, 2
  %v1664 = vmax.f32 %v1662, %v1663
  %v1665 = vrot.slane %v1664, 1
  %v1666 = vmax.f32 %v1664, %v1665
  %v1667 = vsel %vm1369, %v1307, -inf
  %v1668 = vsel %vm1369, %v1308, -inf
  %v1669 = vmax.f32 %v1667, %v1668
  %v1670 = vrot.slane %v1669, 4
  %v1671 = vmax.f32 %v1669, %v1670
  %v1672 = vrot.slane %v1671, 2
  %v1673 = vmax.f32 %v1671, %v1672
  %v1674 = vrot.slane %v1673, 1
  %v1675 = vmax.f32 %v1673, %v1674
  %v1676 = vsel %vm1369, %v1309, -inf
  %v1677 = vsel %vm1369, %v1310, -inf
  %v1678 = vmax.f32 %v1676, %v1677
  %v1679 = vrot.slane %v1678, 4
  %v1680 = vmax.f32 %v1678, %v1679
  %v1681 = vrot.slane %v1680, 2
  %v1682 = vmax.f32 %v1680, %v1681
  %v1683 = vrot.slane %v1682, 1
  %v1684 = vmax.f32 %v1682, %v1683
  %v1685 = vsel %vm1369, %v1311, -inf
  %v1686 = vsel %vm1369, %v1312, -inf
  %v1687 = vmax.f32 %v1685, %v1686
  %v1688 = vrot.slane %v1687, 4
  %v1689 = vmax.f32 %v1687, %v1688
  %v1690 = vrot.slane %v1689, 2
  %v1691 = vmax.f32 %v1689, %v1690
  %v1692 = vrot.slane %v1691, 1
  %v1693 = vmax.f32 %v1691, %v1692
  %v1694 = vsel %vm1369, %v1313, -inf
  %v1695 = vsel %vm1369, %v1314, -inf
  %v1696 = vmax.f32 %v1694, %v1695
  %v1697 = vrot.slane %v1696, 4
  %v1698 = vmax.f32 %v1696, %v1697
  %v1699 = vrot.slane %v1698, 2
  %v1700 = vmax.f32 %v1698, %v1699
  %v1701 = vrot.slane %v1700, 1
  %v1702 = vmax.f32 %v1700, %v1701
  %v1703 = vsel %vm1369, %v1315, -inf
  %v1704 = vsel %vm1369, %v1316, -inf
  %v1705 = vmax.f32 %v1703, %v1704
  %v1706 = vrot.slane %v1705, 4
  %v1707 = vmax.f32 %v1705, %v1706
  %v1708 = vrot.slane %v1707, 2
  %v1709 = vmax.f32 %v1707, %v1708
  %v1710 = vrot.slane %v1709, 1
  %v1711 = vmax.f32 %v1709, %v1710
  %v1712 = vsel %vm1369, %v1317, -inf
  %v1713 = vsel %vm1369, %v1318, -inf
  %v1714 = vmax.f32 %v1712, %v1713
  %v1715 = vrot.slane %v1714, 4
  %v1716 = vmax.f32 %v1714, %v1715
  %v1717 = vrot.slane %v1716, 2
  %v1718 = vmax.f32 %v1716, %v1717
  %v1719 = vrot.slane %v1718, 1
  %v1720 = vmax.f32 %v1718, %v1719
  %v1721 = vsel %vm1369, %v1319, -inf
  %v1722 = vsel %vm1369, %v1320, -inf
  %v1723 = vmax.f32 %v1721, %v1722
  %v1724 = vrot.slane %v1723, 4
  %v1725 = vmax.f32 %v1723, %v1724
  %v1726 = vrot.slane %v1725, 2
  %v1727 = vmax.f32 %v1725, %v1726
  %v1728 = vrot.slane %v1727, 1
  %v1729 = vmax.f32 %v1727, %v1728
  %v1730 = vsel %vm1369, %v1321, -inf
  %v1731 = vsel %vm1369, %v1322, -inf
  %v1732 = vmax.f32 %v1730, %v1731
  %v1733 = vrot.slane %v1732, 4
  %v1734 = vmax.f32 %v1732, %v1733
  %v1735 = vrot.slane %v1734, 2
  %v1736 = vmax.f32 %v1734, %v1735
  %v1737 = vrot.slane %v1736, 1
  %v1738 = vmax.f32 %v1736, %v1737
  %v1739 = vsel %vm1369, %v1323, -inf
  %v1740 = vsel %vm1369, %v1324, -inf
  %v1741 = vmax.f32 %v1739, %v1740
  %v1742 = vrot.slane %v1741, 4
  %v1743 = vmax.f32 %v1741, %v1742
  %v1744 = vrot.slane %v1743, 2
  %v1745 = vmax.f32 %v1743, %v1744
  %v1746 = vrot.slane %v1745, 1
  %v1747 = vmax.f32 %v1745, %v1746
  %v1748 = vsel %vm1369, %v1325, -inf
  %v1749 = vsel %vm1369, %v1326, -inf
  %v1750 = vmax.f32 %v1748, %v1749
  %v1751 = vrot.slane %v1750, 4
  %v1752 = vmax.f32 %v1750, %v1751
  %v1753 = vrot.slane %v1752, 2
  %v1754 = vmax.f32 %v1752, %v1753
  %v1755 = vrot.slane %v1754, 1
  %v1756 = vmax.f32 %v1754, %v1755
  %v1757 = vsel %vm1369, %v1327, -inf
  %v1758 = vsel %vm1369, %v1328, -inf
  %v1759 = vmax.f32 %v1757, %v1758
  %v1760 = vrot.slane %v1759, 4
  %v1761 = vmax.f32 %v1759, %v1760
  %v1762 = vrot.slane %v1761, 2
  %v1763 = vmax.f32 %v1761, %v1762
  %v1764 = vrot.slane %v1763, 1
  %v1765 = vmax.f32 %v1763, %v1764
  %v1766 = vsel %vm1369, %v1329, -inf
  %v1767 = vsel %vm1369, %v1330, -inf
  %v1768 = vmax.f32 %v1766, %v1767
  %v1769 = vrot.slane %v1768, 4
  %v1770 = vmax.f32 %v1768, %v1769
  %v1771 = vrot.slane %v1770, 2
  %v1772 = vmax.f32 %v1770, %v1771
  %v1773 = vrot.slane %v1772, 1
  %v1774 = vmax.f32 %v1772, %v1773
  %v1775 = vsel %vm1369, %v1331, -inf
  %v1776 = vsel %vm1369, %v1332, -inf
  %v1777 = vmax.f32 %v1775, %v1776
  %v1778 = vrot.slane %v1777, 4
  %v1779 = vmax.f32 %v1777, %v1778
  %v1780 = vrot.slane %v1779, 2
  %v1781 = vmax.f32 %v1779, %v1780
  %v1782 = vrot.slane %v1781, 1
  %v1783 = vmax.f32 %v1781, %v1782
  %v1784 = vsel %vm1369, %v1333, -inf
  %v1785 = vsel %vm1369, %v1334, -inf
  %v1786 = vmax.f32 %v1784, %v1785
  %v1787 = vrot.slane %v1786, 4
  %v1788 = vmax.f32 %v1786, %v1787
  %v1789 = vrot.slane %v1788, 2
  %v1790 = vmax.f32 %v1788, %v1789
  %v1791 = vrot.slane %v1790, 1
  %v1792 = vmax.f32 %v1790, %v1791
  %v1793 = vsel %vm1369, %v1335, -inf
  %v1794 = vsel %vm1369, %v1336, -inf
  %v1795 = vmax.f32 %v1793, %v1794
  %v1796 = vrot.slane %v1795, 4
  %v1797 = vmax.f32 %v1795, %v1796
  %v1798 = vrot.slane %v1797, 2
  %v1799 = vmax.f32 %v1797, %v1798
  %v1800 = vrot.slane %v1799, 1
  %v1801 = vmax.f32 %v1799, %v1800
  %v1802 = vsel %vm1369, %v1337, -inf
  %v1803 = vsel %vm1369, %v1338, -inf
  %v1804 = vmax.f32 %v1802, %v1803
  %v1805 = vrot.slane %v1804, 4
  %v1806 = vmax.f32 %v1804, %v1805
  %v1807 = vrot.slane %v1806, 2
  %v1808 = vmax.f32 %v1806, %v1807
  %v1809 = vrot.slane %v1808, 1
  %v1810 = vmax.f32 %v1808, %v1809
  %v1811 = vsel %vm1369, %v1339, -inf
  %v1812 = vsel %vm1369, %v1340, -inf
  %v1813 = vmax.f32 %v1811, %v1812
  %v1814 = vrot.slane %v1813, 4
  %v1815 = vmax.f32 %v1813, %v1814
  %v1816 = vrot.slane %v1815, 2
  %v1817 = vmax.f32 %v1815, %v1816
  %v1818 = vrot.slane %v1817, 1
  %v1819 = vmax.f32 %v1817, %v1818
  %v1820 = vsel %vm1369, %v1341, -inf
  %v1821 = vsel %vm1369, %v1342, -inf
  %v1822 = vmax.f32 %v1820, %v1821
  %v1823 = vrot.slane %v1822, 4
  %v1824 = vmax.f32 %v1822, %v1823
  %v1825 = vrot.slane %v1824, 2
  %v1826 = vmax.f32 %v1824, %v1825
  %v1827 = vrot.slane %v1826, 1
  %v1828 = vmax.f32 %v1826, %v1827
  %v1829 = vsel %vm1369, %v1343, -inf
  %v1830 = vsel %vm1369, %v1344, -inf
  %v1831 = vmax.f32 %v1829, %v1830
  %v1832 = vrot.slane %v1831, 4
  %v1833 = vmax.f32 %v1831, %v1832
  %v1834 = vrot.slane %v1833, 2
  %v1835 = vmax.f32 %v1833, %v1834
  %v1836 = vrot.slane %v1835, 1
  %v1837 = vmax.f32 %v1835, %v1836
  %v1838 = vsel %vm1369, %v1345, -inf
  %v1839 = vsel %vm1369, %v1346, -inf
  %v1840 = vmax.f32 %v1838, %v1839
  %v1841 = vrot.slane %v1840, 4
  %v1842 = vmax.f32 %v1840, %v1841
  %v1843 = vrot.slane %v1842, 2
  %v1844 = vmax.f32 %v1842, %v1843
  %v1845 = vrot.slane %v1844, 1
  %v1846 = vmax.f32 %v1844, %v1845
  %v1847 = vsel %vm1369, %v1347, -inf
  %v1848 = vsel %vm1369, %v1348, -inf
  %v1849 = vmax.f32 %v1847, %v1848
  %v1850 = vrot.slane %v1849, 4
  %v1851 = vmax.f32 %v1849, %v1850
  %v1852 = vrot.slane %v1851, 2
  %v1853 = vmax.f32 %v1851, %v1852
  %v1854 = vrot.slane %v1853, 1
  %v1855 = vmax.f32 %v1853, %v1854
  %v1856 = vsel %vm1369, %v1349, -inf
  %v1857 = vsel %vm1369, %v1350, -inf
  %v1858 = vmax.f32 %v1856, %v1857
  %v1859 = vrot.slane %v1858, 4
  %v1860 = vmax.f32 %v1858, %v1859
  %v1861 = vrot.slane %v1860, 2
  %v1862 = vmax.f32 %v1860, %v1861
  %v1863 = vrot.slane %v1862, 1
  %v1864 = vmax.f32 %v1862, %v1863
  %v1865 = vsel %vm1369, %v1351, -inf
  %v1866 = vsel %vm1369, %v1352, -inf
  %v1867 = vmax.f32 %v1865, %v1866
  %v1868 = vrot.slane %v1867, 4
  %v1869 = vmax.f32 %v1867, %v1868
  %v1870 = vrot.slane %v1869, 2
  %v1871 = vmax.f32 %v1869, %v1870
  %v1872 = vrot.slane %v1871, 1
  %v1873 = vmax.f32 %v1871, %v1872
  %v1874 = vsel %vm1369, %v1353, -inf
  %v1875 = vsel %vm1369, %v1354, -inf
  %v1876 = vmax.f32 %v1874, %v1875
  %v1877 = vrot.slane %v1876, 4
  %v1878 = vmax.f32 %v1876, %v1877
  %v1879 = vrot.slane %v1878, 2
  %v1880 = vmax.f32 %v1878, %v1879
  %v1881 = vrot.slane %v1880, 1
  %v1882 = vmax.f32 %v1880, %v1881
  %v1883 = vsel %vm1369, %v1355, -inf
  %v1884 = vsel %vm1369, %v1356, -inf
  %v1885 = vmax.f32 %v1883, %v1884
  %v1886 = vrot.slane %v1885, 4
  %v1887 = vmax.f32 %v1885, %v1886
  %v1888 = vrot.slane %v1887, 2
  %v1889 = vmax.f32 %v1887, %v1888
  %v1890 = vrot.slane %v1889, 1
  %v1891 = vmax.f32 %v1889, %v1890
  %v1892 = vsel %vm1369, %v1357, -inf
  %v1893 = vsel %vm1369, %v1358, -inf
  %v1894 = vmax.f32 %v1892, %v1893
  %v1895 = vrot.slane %v1894, 4
  %v1896 = vmax.f32 %v1894, %v1895
  %v1897 = vrot.slane %v1896, 2
  %v1898 = vmax.f32 %v1896, %v1897
  %v1899 = vrot.slane %v1898, 1
  %v1900 = vmax.f32 %v1898, %v1899
  %v1901 = vsel %vm1369, %v1359, -inf
  %v1902 = vsel %vm1369, %v1360, -inf
  %v1903 = vmax.f32 %v1901, %v1902
  %v1904 = vrot.slane %v1903, 4
  %v1905 = vmax.f32 %v1903, %v1904
  %v1906 = vrot.slane %v1905, 2
  %v1907 = vmax.f32 %v1905, %v1906
  %v1908 = vrot.slane %v1907, 1
  %v1909 = vmax.f32 %v1907, %v1908
  %v1910 = vsel %vm1369, %v1361, -inf
  %v1911 = vsel %vm1369, %v1362, -inf
  %v1912 = vmax.f32 %v1910, %v1911
  %v1913 = vrot.slane %v1912, 4
  %v1914 = vmax.f32 %v1912, %v1913
  %v1915 = vrot.slane %v1914, 2
  %v1916 = vmax.f32 %v1914, %v1915
  %v1917 = vrot.slane %v1916, 1
  %v1918 = vmax.f32 %v1916, %v1917
  %v1919 = vsel %vm1369, %v1363, -inf
  %v1920 = vsel %vm1369, %v1364, -inf
  %v1921 = vmax.f32 %v1919, %v1920
  %v1922 = vrot.slane %v1921, 4
  %v1923 = vmax.f32 %v1921, %v1922
  %v1924 = vrot.slane %v1923, 2
  %v1925 = vmax.f32 %v1923, %v1924
  %v1926 = vrot.slane %v1925, 1
  %v1927 = vmax.f32 %v1925, %v1926
  %v1928 = vsel %vm1369, %v1365, -inf
  %v1929 = vsel %vm1369, %v1366, -inf
  %v1930 = vmax.f32 %v1928, %v1929
  %v1931 = vrot.slane %v1930, 4
  %v1932 = vmax.f32 %v1930, %v1931
  %v1933 = vrot.slane %v1932, 2
  %v1934 = vmax.f32 %v1932, %v1933
  %v1935 = vrot.slane %v1934, 1
  %v1936 = vmax.f32 %v1934, %v1935
  %v1937 = vsel %vm1369, %v1367, -inf
  %v1938 = vsel %vm1369, %v1368, -inf
  %v1939 = vmax.f32 %v1937, %v1938
  %v1940 = vrot.slane %v1939, 4
  %v1941 = vmax.f32 %v1939, %v1940
  %v1942 = vrot.slane %v1941, 2
  %v1943 = vmax.f32 %v1941, %v1942
  %v1944 = vrot.slane %v1943, 1
  %v1945 = vmax.f32 %v1943, %v1944
  %vm2010 = vcmask 1041409
  %v2011 = vsel %vm2010, %v1387, %v1378
  %vm2012 = vcmask 1042434
  %v2013 = vsel %vm2012, %v1396, %v2011
  %vm2014 = vcmask 1043459
  %v2015 = vsel %vm2014, %v1405, %v2013
  %vm2016 = vcmask 1044484
  %v2017 = vsel %vm2016, %v1414, %v2015
  %vm2018 = vcmask 1045509
  %v2019 = vsel %vm2018, %v1423, %v2017
  %vm2020 = vcmask 1046534
  %v2021 = vsel %vm2020, %v1432, %v2019
  %vm2022 = vcmask 1047559
  %v2023 = vsel %vm2022, %v1441, %v2021
  %v2024 = vsel %vm2010, %v1459, %v1450
  %v2025 = vsel %vm2012, %v1468, %v2024
  %v2026 = vsel %vm2014, %v1477, %v2025
  %v2027 = vsel %vm2016, %v1486, %v2026
  %v2028 = vsel %vm2018, %v1495, %v2027
  %v2029 = vsel %vm2020, %v1504, %v2028
  %v2030 = vsel %vm2022, %v1513, %v2029
  %v2031 = vsel %vm2010, %v1531, %v1522
  %v2032 = vsel %vm2012, %v1540, %v2031
  %v2033 = vsel %vm2014, %v1549, %v2032
  %v2034 = vsel %vm2016, %v1558, %v2033
  %v2035 = vsel %vm2018, %v1567, %v2034
  %v2036 = vsel %vm2020, %v1576, %v2035
  %v2037 = vsel %vm2022, %v1585, %v2036
  %v2038 = vsel %vm2010, %v1603, %v1594
  %v2039 = vsel %vm2012, %v1612, %v2038
  %v2040 = vsel %vm2014, %v1621, %v2039
  %v2041 = vsel %vm2016, %v1630, %v2040
  %v2042 = vsel %vm2018, %v1639, %v2041
  %v2043 = vsel %vm2020, %v1648, %v2042
  %v2044 = vsel %vm2022, %v1657, %v2043
  %v2045 = vsel %vm2010, %v1675, %v1666
  %v2046 = vsel %vm2012, %v1684, %v2045
  %v2047 = vsel %vm2014, %v1693, %v2046
  %v2048 = vsel %vm2016, %v1702, %v2047
  %v2049 = vsel %vm2018, %v1711, %v2048
  %v2050 = vsel %vm2020, %v1720, %v2049
  %v2051 = vsel %vm2022, %v1729, %v2050
  %v2052 = vsel %vm2010, %v1747, %v1738
  %v2053 = vsel %vm2012, %v1756, %v2052
  %v2054 = vsel %vm2014, %v1765, %v2053
  %v2055 = vsel %vm2016, %v1774, %v2054
  %v2056 = vsel %vm2018, %v1783, %v2055
  %v2057 = vsel %vm2020, %v1792, %v2056
  %v2058 = vsel %vm2022, %v1801, %v2057
  %v2059 = vsel %vm2010, %v1819, %v1810
  %v2060 = vsel %vm2012, %v1828, %v2059
  %v2061 = vsel %vm2014, %v1837, %v2060
  %v2062 = vsel %vm2016, %v1846, %v2061
  %v2063 = vsel %vm2018, %v1855, %v2062
  %v2064 = vsel %vm2020, %v1864, %v2063
  %v2065 = vsel %vm2022, %v1873, %v2064
  %v2066 = vsel %vm2010, %v1891, %v1882
  %v2067 = vsel %vm2012, %v1900, %v2066
  %v2068 = vsel %vm2014, %v1909, %v2067
  %v2069 = vsel %vm2016, %v1918, %v2068
  %v2070 = vsel %vm2018, %v1927, %v2069
  %v2071 = vsel %vm2020, %v1936, %v2070
  %v2072 = vsel %vm2022, %v1945, %v2071
  %2081 = vst.msk [vmem:[%s3] sm:$0xff] %vm1369, %v2023
  %2082 = vst.msk [vmem:[%s3 + $0x8] sm:$0xff] %vm1369, %v2030
  %2083 = vst.msk [vmem:[%s3 + $0x10] sm:$0xff] %vm1369, %v2037
  %2084 = vst.msk [vmem:[%s3 + $0x18] sm:$0xff] %vm1369, %v2044
  %2085 = vst.msk [vmem:[%s3 + $0x20] sm:$0xff] %vm1369, %v2051
  %2086 = vst.msk [vmem:[%s3 + $0x28] sm:$0xff] %vm1369, %v2058
  %2087 = vst.msk [vmem:[%s3 + $0x30] sm:$0xff] %vm1369, %v2065
  %2088 = vst.msk [vmem:[%s3 + $0x38] sm:$0xff] %vm1369, %v2072
  // Predicated region
  $region14: #{forward.2} parent=0 // pred_check
    _
  $region15: #{forward.2} parent=0 // pred_check_branch
    %2090 = sbr.rel (0) target = $region17
  $region16: #{forward.2} parent=0 // pred_region
    _
  $region17: #{forward.2} parent=0 // pred_fallthru
    _
  // Predicated region
  $region18: #{forward.2} parent=0 // pred_check
    _
  $region19: #{forward.2} parent=0 // pred_check_branch
    %2092 = sbr.rel (0) target = $region21
  $region20: #{forward.2} parent=0 // pred_region
    _
  $region21: #{forward.2} parent=0 // pred_fallthru
    _

</llo_original>
